<compile_context>
chip_gen: v5e
topology: v5e:2x2
jax: 0.10.0
libtpu: 0.0.40
codegen_flags: <defaults>
</compile_context>

<pallas_src>
import functools

import jax
import jax.numpy as jnp
from jax.experimental import pallas as pl
from jax.experimental.pallas import tpu as pltpu

EPS = 1e-5


def _round_up(x, m):
    return (x + m - 1) // m * m


def _vmem_limit_bytes():
    # ~75% of physical VMEM: ~96 MiB on v5e/v6e (128 MiB), ~48 MiB on v7x (64 MiB / TC).
    try:
        cap = int(pltpu.get_tpu_info().vmem_capacity_bytes)
    except Exception:
        cap = 64 * 1024 * 1024
    return min((cap * 3) // 4, 100 * 1024 * 1024)


VMEM_LIMIT = _vmem_limit_bytes()


# ----------------------------------------------------------------------------- kernels

def matmul_stats_kernel(p_ref, w_ref, y_ref, s_ref):
    """One (M,N) tile of conv-as-matmul: Y = P @ W (bf16 in, f32 acc), Y stored in bf16.
    Rows 0/1 of s_ref get per-channel sum / sum-of-squares of the f32 accumulator."""
    y = jnp.dot(p_ref[...], w_ref[...], preferred_element_type=jnp.float32)
    y_ref[...] = y.astype(y_ref.dtype)
    s_ref[0:1, :] = jnp.sum(y, axis=0, keepdims=True)
    s_ref[1:2, :] = jnp.sum(y * y, axis=0, keepdims=True)
    # rows 2..7 are never read downstream


def bn_relu_kernel(y_ref, ab_ref, o_ref):
    """out = relu(y*scale + shift); ab rows: 0=scale, 1=shift (per channel)."""
    o = y_ref[...].astype(jnp.float32) * ab_ref[0:1, :] + ab_ref[1:2, :]
    o_ref[...] = jnp.maximum(o, 0.0).astype(o_ref.dtype)


def bn_add_relu_kernel(y_ref, r_ref, ab_ref, o_ref):
    """Conv shortcut: out = relu(y*s2 + b2 + r*sr + br); ab rows: 0=s2,1=b2,2=sr,3=br."""
    o = (y_ref[...].astype(jnp.float32) * ab_ref[0:1, :] + ab_ref[1:2, :]
         + r_ref[...].astype(jnp.float32) * ab_ref[2:3, :] + ab_ref[3:4, :])
    o_ref[...] = jnp.maximum(o, 0.0).astype(o_ref.dtype)


def bn_addid_relu_kernel(y_ref, r_ref, ab_ref, o_ref):
    """Identity shortcut: out = relu(y*s2 + b2 + r); no affine applied to r."""
    o = (y_ref[...].astype(jnp.float32) * ab_ref[0:1, :] + ab_ref[1:2, :]
         + r_ref[...].astype(jnp.float32))
    o_ref[...] = jnp.maximum(o, 0.0).astype(o_ref.dtype)


# ----------------------------------------------------------------------------- pallas wrappers

def _mosaic_params(n_axes):
    return pltpu.CompilerParams(dimension_semantics=("parallel",) * n_axes,
                                vmem_limit_bytes=VMEM_LIMIT)


def _matmul_stats(p, w, tm, tn, use_pallas=True):
    """p: (Mp, Kpad) bf16, w: (Kpad, Cpad) bf16 -> (Y (Mp,Cpad) bf16, stats (ntm*8,Cpad) f32)."""
    Mp, K = p.shape
    Cp = w.shape[1]
    if not use_pallas:                              # matched-math plain-JAX fallback
        y = jnp.dot(p, w, preferred_element_type=jnp.float32)
        s1 = jnp.sum(y, axis=0, keepdims=True)
        s2 = jnp.sum(y * y, axis=0, keepdims=True)
        stats = jnp.concatenate([s1, s2, jnp.zeros((6, Cp), jnp.float32)], axis=0)
        return y.astype(jnp.bfloat16), stats
    ntm, ntn = Mp // tm, Cp // tn
    return pl.pallas_call(
        matmul_stats_kernel,
        out_shape=(jax.ShapeDtypeStruct((Mp, Cp), jnp.bfloat16),
                   jax.ShapeDtypeStruct((ntm * 8, Cp), jnp.float32)),
        grid=(ntm, ntn),
        in_specs=[pl.BlockSpec((tm, K), lambda i, j: (i, 0)),
                  pl.BlockSpec((K, tn), lambda i, j: (0, j))],
        out_specs=(pl.BlockSpec((tm, tn), lambda i, j: (i, j)),
                   pl.BlockSpec((8, tn), lambda i, j: (i, j))),
        compiler_params=_mosaic_params(2),
    )(p, w)


def _bn_relu(y, ab, tm, use_pallas=True):
    if not use_pallas:
        return jnp.maximum(y.astype(jnp.float32) * ab[0:1, :] + ab[1:2, :],
                           0.0).astype(jnp.bfloat16)
    Mp, Cp = y.shape
    return pl.pallas_call(
        bn_relu_kernel,
        out_shape=jax.ShapeDtypeStruct((Mp, Cp), jnp.bfloat16),
        grid=(Mp // tm,),
        in_specs=[pl.BlockSpec((tm, Cp), lambda i: (i, 0)),
                  pl.BlockSpec((8, Cp), lambda i: (0, 0))],
        out_specs=pl.BlockSpec((tm, Cp), lambda i: (i, 0)),
        compiler_params=_mosaic_params(1),
    )(y, ab)


def _bn_add_relu(y, r, ab, tm, identity_shortcut, use_pallas=True):
    if not use_pallas:
        yf = y.astype(jnp.float32)
        rf = r.astype(jnp.float32)
        o = yf * ab[0:1, :] + ab[1:2, :]
        o = o + (rf if identity_shortcut else rf * ab[2:3, :] + ab[3:4, :])
        return jnp.maximum(o, 0.0)
    kernel = bn_addid_relu_kernel if identity_shortcut else bn_add_relu_kernel
    Mp, Cp = y.shape
    return pl.pallas_call(
        kernel,
        out_shape=jax.ShapeDtypeStruct((Mp, Cp), jnp.float32),
        grid=(Mp // tm,),
        in_specs=[pl.BlockSpec((tm, Cp), lambda i: (i, 0)),
                  pl.BlockSpec((tm, Cp), lambda i: (i, 0)),
                  pl.BlockSpec((8, Cp), lambda i: (0, 0))],
        out_specs=pl.BlockSpec((tm, Cp), lambda i: (i, 0)),
        compiler_params=_mosaic_params(1),
    )(y, r, ab)


# ----------------------------------------------------------------------------- glue

def im2col(x_nhwc, ksize, stride, pad):
    """x: (N,H,W,C) -> ((N*Ho*Wo, ksize*ksize*C), (N,Ho,Wo)).  Pure slicing/reshape."""
    N, H, W, C = x_nhwc.shape
    if pad:
        x_nhwc = jnp.pad(x_nhwc, ((0, 0), (pad, pad), (pad, pad), (0, 0)))
    Ho = (H + 2 * pad - ksize) // stride + 1
    Wo = (W + 2 * pad - ksize) // stride + 1
    cols = []
    for dy in range(ksize):
        for dx in range(ksize):
            cols.append(x_nhwc[:, dy:dy + stride * Ho:stride, dx:dx + stride * Wo:stride, :])
    patches = jnp.stack(cols, axis=3)                      # (N, Ho, Wo, k*k, C)
    return patches.reshape(N * Ho * Wo, ksize * ksize * C), (N, Ho, Wo)


def _w_to_mat(w_oihw, k_pad, c_pad):
    """PyTorch conv weight (Cout,Cin,kh,kw) -> bf16 (k_pad, c_pad) in im2col tap order."""
    Cout, Cin, kh, kw = w_oihw.shape
    w = jnp.transpose(w_oihw, (2, 3, 1, 0)).reshape(kh * kw * Cin, Cout)
    w = jnp.pad(w, ((0, k_pad - kh * kw * Cin), (0, c_pad - Cout)))
    return w.astype(jnp.bfloat16)


def _pad_cols(a, c):
    return jnp.pad(a, ((0, 0), (0, c - a.shape[-1])))


def _pad_rows(a, mp):
    return jnp.pad(a, ((0, mp - a.shape[0]), (0, 0)))


def _pad_vec(v, c):
    return jnp.pad(jnp.asarray(v, jnp.float32), (0, c - v.shape[0]))


def _stats_to_affine(stats, gamma_p, beta_p, m_real):
    """Fold batch mean/var (from per-tile sums) + gamma/beta into one per-channel affine."""
    s = stats.reshape(-1, 8, stats.shape[-1])
    tot = jnp.sum(s[:, 0, :], axis=0)
    tot2 = jnp.sum(s[:, 1, :], axis=0)
    mean = tot / m_real
    var = jnp.maximum(tot2 / m_real - mean * mean, 0.0)    # biased variance (train mode)
    scale = gamma_p * jax.lax.rsqrt(var + EPS)
    shift = beta_p - mean * scale
    return scale, shift


def _pack_affine(rows):
    a = jnp.stack(rows, axis=0).astype(jnp.float32)
    return jnp.pad(a, ((0, 8 - a.shape[0]), (0, 0)))       # (8, Cpad), sublane-aligned


def _choose_tiles(M, Kmax, Cpad):
    """Pick (tm, tn): 256-aligned N tiles when possible; tm from {1024,512,256} under a
    VMEM budget while keeping >= 2 M-tiles (so v7x's two TensorCores both get work)."""
    tn = 256 if Cpad % 256 == 0 else 128
    budget = int(VMEM_LIMIT * 0.6)
    for cand in (1024, 512, 256):
        need = 2 * (cand * Kmax * 2 + Kmax * tn * 2 + cand * tn * 2 + 8 * tn * 4)
        if M >= 2 * cand and need <= budget:
            return cand, tn
    if M >= 256:
        return 256, tn
    return _round_up(max(M, 16), 16), tn


# ----------------------------------------------------------------------------- param packing

def pack_residual_block_params(params, inchannel, outchannel, stride):
    """Transpose/pad/bf16-cast all weights and pad gamma/beta ONCE, outside the jitted fwd."""
    Cpad = _round_up(outchannel, 128)
    K1 = _round_up(9 * inchannel, 128)
    K2 = _round_up(9 * outchannel, 128)
    packed = {
        "w1": _w_to_mat(params["w1"], K1, Cpad),
        "w2": _w_to_mat(params["w2"], K2, Cpad),
        "g1": _pad_vec(params["g1"], Cpad), "b1": _pad_vec(params["b1"], Cpad),
        "g2": _pad_vec(params["g2"], Cpad), "b2": _pad_vec(params["b2"], Cpad),
    }
    if stride != 1 or inchannel != outchannel:
        Ks = _round_up(inchannel, 128)
        packed["ws"] = _w_to_mat(params["ws"], Ks, Cpad)
        packed["gs"] = _pad_vec(params["gs"], Cpad)
        packed["bs"] = _pad_vec(params["bs"], Cpad)
    return packed


# ----------------------------------------------------------------------------- forward

def residual_block_forward(x_nchw, packed, *, out_channels, stride=1, use_pallas=True):
    """Forward pass of ResidualBlock.  Input/output in NCHW (PyTorch convention)."""
    x = jnp.transpose(x_nchw, (0, 2, 3, 1)).astype(jnp.bfloat16)   # -> NHWC, bf16 MXU input
    N, H, W, Cin = x.shape
    Cout = out_channels
    Cpad = packed["w1"].shape[1]
    has_conv_shortcut = "ws" in packed

    K1 = packed["w1"].shape[0]
    K2 = packed["w2"].shape[0]

    # left branch, conv1 (3x3, stride, pad 1) -> BN1 -> ReLU
    p1, (_, Ho, Wo) = im2col(x, 3, stride, 1)
    M = N * Ho * Wo
    tm, tn = _choose_tiles(M, max(K1, K2), Cpad)
    Mp = _round_up(M, tm)
    p1 = _pad_rows(_pad_cols(p1, K1), Mp)                  # K padded to mult of 128 (neutral)
    y1, st1 = _matmul_stats(p1, packed["w1"], tm, tn, use_pallas)
    sc1, sh1 = _stats_to_affine(st1, packed["g1"], packed["b1"], M)
    a1 = _bn_relu(y1, _pack_affine([sc1, sh1]), tm, use_pallas)    # bf16

    # left branch, conv2 (3x3, stride 1, pad 1) -> BN2 (affine applied in the fused pass)
    a1_sp = a1[:M, :Cout].reshape(N, Ho, Wo, Cout)                 # bf16, no extra convert
    p2, _ = im2col(a1_sp, 3, 1, 1)
    p2 = _pad_rows(_pad_cols(p2, K2), Mp)
    y2, st2 = _matmul_stats(p2, packed["w2"], tm, tn, use_pallas)
    sc2, sh2 = _stats_to_affine(st2, packed["g2"], packed["b2"], M)

    # shortcut branch
    if has_conv_shortcut:
        Ks = packed["ws"].shape[0]
        ps, _ = im2col(x, 1, stride, 0)
        ps = _pad_rows(_pad_cols(ps, Ks), Mp)
        r, sts = _matmul_stats(ps, packed["ws"], tm, tn, use_pallas)
        scs, shs = _stats_to_affine(sts, packed["gs"], packed["bs"], M)
        ab = _pack_affine([sc2, sh2, scs, shs])
    else:
        # identity shortcut: bf16 channel-padded view of x, no extra affine in the kernel
        r = _pad_rows(_pad_cols(x.reshape(M, Cin), Cpad), Mp)
        ab = _pack_affine([sc2, sh2])

    # fused: BN2 affine + shortcut (BN) + residual add + final ReLU
    out = _bn_add_relu(y2, r, ab, tm, identity_shortcut=not has_conv_shortcut,
                       use_pallas=use_pallas)
    out = out[:M, :Cout].reshape(N, Ho, Wo, Cout)
    return jnp.transpose(out, (0, 3, 1, 2))                        # -> NCHW


# ----------------------------------------------------------------------------- f32 reference

def _bn_train_f32(y, gamma, beta):
    mean = jnp.mean(y, axis=0, keepdims=True)
    var = jnp.mean((y - mean) ** 2, axis=0, keepdims=True)        # biased (PyTorch train)
    return (y - mean) * jax.lax.rsqrt(var + EPS) * gamma.reshape(1, -1) + beta.reshape(1, -1)


def residual_block_reference_f32(x_nchw, params, stride=1):
    x = jnp.transpose(x_nchw, (0, 2, 3, 1)).astype(jnp.float32)
    N, H, W, Cin = x.shape
    Cout = params["w1"].shape[0]

    def wmat(w):
        return jnp.transpose(w, (2, 3, 1, 0)).reshape(-1, w.shape[0])

    p1, (_, Ho, Wo) = im2col(x, 3, stride, 1)
    y1 = jnp.maximum(_bn_train_f32(p1 @ wmat(params["w1"]), params["g1"], params["b1"]), 0.0)
    p2, _ = im2col(y1.reshape(N, Ho, Wo, Cout), 3, 1, 1)
    y2 = _bn_train_f32(p2 @ wmat(params["w2"]), params["g2"], params["b2"])
    if stride != 1 or Cin != Cout:
        ps, _ = im2col(x, 1, stride, 0)
        sc = _bn_train_f32(ps @ wmat(params["ws"]), params["gs"], params["bs"])
    else:
        sc = x.reshape(-1, Cout)
    out = jnp.maximum(y2 + sc, 0.0).reshape(N, Ho, Wo, Cout)
    return jnp.transpose(out, (0, 3, 1, 2))


# ----------------------------------------------------------------------------- params & main

def init_residual_block_params(key, inchannel, outchannel, stride=1):
    ks = jax.random.split(key, 8)
    p = {
        "w1": 0.1 * jax.random.normal(ks[0], (outchannel, inchannel, 3, 3), jnp.float32),
        "g1": 1.0 + 0.1 * jax.random.normal(ks[1], (outchannel,), jnp.float32),
        "b1": 0.1 * jax.random.normal(ks[2], (outchannel,), jnp.float32),
        "w2": 0.1 * jax.random.normal(ks[3], (outchannel, outchannel, 3, 3), jnp.float32),
        "g2": 1.0 + 0.1 * jax.random.normal(ks[4], (outchannel,), jnp.float32),
        "b2": 0.1 * jax.random.normal(ks[5], (outchannel,), jnp.float32),
    }
    if stride != 1 or inchannel != outchannel:
        p["ws"] = 0.1 * jax.random.normal(ks[6], (outchannel, inchannel, 1, 1), jnp.float32)
        p["gs"] = 1.0 + 0.05 * jnp.arange(outchannel, dtype=jnp.float32)
        p["bs"] = 0.05 * jax.random.normal(ks[7], (outchannel,), jnp.float32)
    return p


if __name__ == "__main__":
    key = jax.random.PRNGKey(0)
    k_x, k_p = jax.random.split(key)

    N, Cin, H, W = 2, 4, 16, 16
    Cout, stride = 8, 1                   # inchannel != outchannel -> 1x1-conv shortcut path

    x = jax.random.normal(k_x, (N, Cin, H, W), jnp.float32)   # NCHW, like PyTorch
    params = init_residual_block_params(k_p, Cin, Cout, stride)

    # pack weights / BN affine ONCE, outside the jitted per-step forward
    packed = pack_residual_block_params(params, Cin, Cout, stride)

    fwd = jax.jit(functools.partial(residual_block_forward,
                                    out_channels=Cout, stride=stride, use_pallas=True))
    out = jax.block_until_ready(fwd(x, packed))

    # matched-math reference (same bf16 operands / bf16 intermediates, plain JAX)
    ref_matched = residual_block_forward(x, packed, out_channels=Cout,
                                         stride=stride, use_pallas=False)
    # full-f32 reference with PyTorch training-mode BN semantics
    ref_f32 = residual_block_reference_f32(x, params, stride=stride)

    assert out.shape == (N, Cout, H // stride, W // stride), out.shape
    err_matched = float(jnp.max(jnp.abs(out - ref_matched)))
    err_f32 = float(jnp.max(jnp.abs(out - ref_f32)))
    assert err_matched < 3e-2, err_matched          # bf16 intermediates: loosened tolerance
    assert err_f32 < 0.3, err_f32

    print("KERNEL_OK")
</pallas_src>

<mosaic_0001>
module attributes {stable_mosaic.version = 11 : i64} {
  func.func @bn_relu_kernel(%arg0: i32, %arg1: memref<256x128xbf16, #tpu.memory_space<vmem>>, %arg2: memref<8x128xf32, #tpu.memory_space<vmem>>, %arg3: memref<256x128xbf16, #tpu.memory_space<vmem>>) attributes {dimension_semantics = [#tpu.dimension_semantics<parallel>], iteration_bounds = array<i64: 2>, scalar_prefetch = 0 : i64, scratch_operands = 0 : i64, tpu.core_type = #tpu.core_type<tc>, window_params = [{transform_indices = @transform_0, window_bounds = array<i64: 256, 128>}, {pipeline_mode = #tpu.pipeline_mode<synchronous>, transform_indices = @transform_1, window_bounds = array<i64: 8, 128>}, {transform_indices = @transform_2, window_bounds = array<i64: 256, 128>}]} {
    %c0 = arith.constant 0 : index
    %c0_0 = arith.constant 0 : index
    %0 = vector.load %arg1[%c0, %c0_0] : memref<256x128xbf16, #tpu.memory_space<vmem>>, vector<256x128xbf16>
    %1 = arith.extf %0 : vector<256x128xbf16> to vector<256x128xf32>
    %c0_1 = arith.constant 0 : index
    %c0_2 = arith.constant 0 : index
    %2 = vector.load %arg2[%c0_1, %c0_2] : memref<8x128xf32, #tpu.memory_space<vmem>>, vector<1x128xf32>
    %3 = vector.broadcast %2 : vector<1x128xf32> to vector<256x128xf32>
    %4 = arith.mulf %1, %3 : vector<256x128xf32>
    %c1 = arith.constant 1 : index
    %c0_3 = arith.constant 0 : index
    %5 = vector.load %arg2[%c1, %c0_3] : memref<8x128xf32, #tpu.memory_space<vmem>>, vector<1x128xf32>
    %6 = vector.broadcast %5 : vector<1x128xf32> to vector<256x128xf32>
    %7 = arith.addf %4, %6 : vector<256x128xf32>
    %cst = arith.constant 0.000000e+00 : f32
    %8 = vector.broadcast %cst : f32 to vector<256x128xf32>
    %9 = arith.maximumf %7, %8 : vector<256x128xf32>
    %10 = arith.truncf %9 : vector<256x128xf32> to vector<256x128xbf16>
    %c0_4 = arith.constant 0 : index
    %c0_5 = arith.constant 0 : index
    %11 = vector.load %arg3[%c0_4, %c0_5] : memref<256x128xbf16, #tpu.memory_space<vmem>>, vector<256x128xbf16>
    tpu.vector_store %arg3[%c0_4, %c0_5], %10 {strides = array<i32>} : memref<256x128xbf16, #tpu.memory_space<vmem>>, vector<256x128xbf16>,
    return
  }
  func.func @transform_0(%arg0: i32) -> (i32, i32) {
    %c0_i32 = arith.constant 0 : i32
    %c0_i32_0 = arith.constant 0 : i32
    return %arg0, %c0_i32 : i32, i32
  }
  func.func @transform_1(%arg0: i32) -> (i32, i32) {
    %c0_i32 = arith.constant 0 : i32
    %c0_i32_0 = arith.constant 0 : i32
    %c0_i32_1 = arith.constant 0 : i32
    return %c0_i32, %c0_i32_0 : i32, i32
  }
  func.func @transform_2(%arg0: i32) -> (i32, i32) {
    %c0_i32 = arith.constant 0 : i32
    %c0_i32_0 = arith.constant 0 : i32
    return %arg0, %c0_i32 : i32, i32
  }
}

module attributes {stable_mosaic.version = 11 : i64} {
  func.func @matmul_stats_kernel(%arg0: i32, %arg1: i32, %arg2: memref<256x128xbf16, #tpu.memory_space<vmem>>, %arg3: memref<128x128xbf16, #tpu.memory_space<vmem>>, %arg4: memref<256x128xbf16, #tpu.memory_space<vmem>>, %arg5: memref<8x128xf32, #tpu.memory_space<vmem>>) attributes {dimension_semantics = [#tpu.dimension_semantics<parallel>, #tpu.dimension_semantics<parallel>], iteration_bounds = array<i64: 2, 1>, scalar_prefetch = 0 : i64, scratch_operands = 0 : i64, tpu.core_type = #tpu.core_type<tc>, window_params = [{transform_indices = @transform_0, window_bounds = array<i64: 256, 128>}, {transform_indices = @transform_1, window_bounds = array<i64: 128, 128>}, {transform_indices = @transform_2, window_bounds = array<i64: 256, 128>}, {transform_indices = @transform_3, window_bounds = array<i64: 8, 128>}]} {
    %c0 = arith.constant 0 : index
    %c0_0 = arith.constant 0 : index
    %0 = vector.load %arg2[%c0, %c0_0] : memref<256x128xbf16, #tpu.memory_space<vmem>>, vector<256x128xbf16>
    %c0_1 = arith.constant 0 : index
    %c0_2 = arith.constant 0 : index
    %1 = vector.load %arg3[%c0_1, %c0_2] : memref<128x128xbf16, #tpu.memory_space<vmem>>, vector<128x128xbf16>
    %cst = arith.constant dense<0.000000e+00> : vector<256x128xf32>
    %2 = tpu.matmul %0, %1, %cst {dimension_numbers = #tpu.dot_dimension_numbers<[1], [0], [0], [1], [0, 0, 1, 1], [], []>} : vector<256x128xbf16>, vector<128x128xbf16>, vector<256x128xf32> -> vector<256x128xf32>
    %3 = arith.truncf %2 : vector<256x128xf32> to vector<256x128xbf16>
    %c0_3 = arith.constant 0 : index
    %c0_4 = arith.constant 0 : index
    %4 = vector.load %arg4[%c0_3, %c0_4] : memref<256x128xbf16, #tpu.memory_space<vmem>>, vector<256x128xbf16>
    tpu.vector_store %arg4[%c0_3, %c0_4], %3 {strides = array<i32>} : memref<256x128xbf16, #tpu.memory_space<vmem>>, vector<256x128xbf16>,
    %cst_5 = arith.constant dense<0.000000e+00> : vector<128xf32>
    %5 = vector.multi_reduction <add>, %2, %cst_5 [0] : vector<256x128xf32> to vector<128xf32>
    %6 = vector.shape_cast %5 : vector<128xf32> to vector<1x128xf32>
    %c0_6 = arith.constant 0 : index
    %c0_7 = arith.constant 0 : index
    %7 = vector.load %arg5[%c0_6, %c0_7] : memref<8x128xf32, #tpu.memory_space<vmem>>, vector<1x128xf32>
    tpu.vector_store %arg5[%c0_6, %c0_7], %6 {strides = array<i32>} : memref<8x128xf32, #tpu.memory_space<vmem>>, vector<1x128xf32>,
    %8 = arith.mulf %2, %2 : vector<256x128xf32>
    %cst_8 = arith.constant dense<0.000000e+00> : vector<128xf32>
    %9 = vector.multi_reduction <add>, %8, %cst_8 [0] : vector<256x128xf32> to vector<128xf32>
    %10 = vector.shape_cast %9 : vector<128xf32> to vector<1x128xf32>
    %c1 = arith.constant 1 : index
    %c0_9 = arith.constant 0 : index
    %11 = vector.load %arg5[%c1, %c0_9] : memref<8x128xf32, #tpu.memory_space<vmem>>, vector<1x128xf32>
    tpu.vector_store %arg5[%c1, %c0_9], %10 {strides = array<i32>} : memref<8x128xf32, #tpu.memory_space<vmem>>, vector<1x128xf32>,
    return
  }
  func.func @transform_0(%arg0: i32, %arg1: i32) -> (i32, i32) {
    %c0_i32 = arith.constant 0 : i32
    %c0_i32_0 = arith.constant 0 : i32
    return %arg0, %c0_i32 : i32, i32
  }
  func.func @transform_1(%arg0: i32, %arg1: i32) -> (i32, i32) {
    %c0_i32 = arith.constant 0 : i32
    %c0_i32_0 = arith.constant 0 : i32
    return %c0_i32, %arg1 : i32, i32
  }
  func.func @transform_2(%arg0: i32, %arg1: i32) -> (i32, i32) {
    %c0_i32 = arith.constant 0 : i32
    return %arg0, %arg1 : i32, i32
  }
  func.func @transform_3(%arg0: i32, %arg1: i32) -> (i32, i32) {
    %c0_i32 = arith.constant 0 : i32
    return %arg0, %arg1 : i32, i32
  }
}

module attributes {stable_mosaic.version = 11 : i64} {
  func.func @bn_add_relu_kernel(%arg0: i32, %arg1: memref<256x128xbf16, #tpu.memory_space<vmem>>, %arg2: memref<256x128xbf16, #tpu.memory_space<vmem>>, %arg3: memref<8x128xf32, #tpu.memory_space<vmem>>, %arg4: memref<256x128xf32, #tpu.memory_space<vmem>>) attributes {dimension_semantics = [#tpu.dimension_semantics<parallel>], iteration_bounds = array<i64: 2>, scalar_prefetch = 0 : i64, scratch_operands = 0 : i64, tpu.core_type = #tpu.core_type<tc>, window_params = [{transform_indices = @transform_0, window_bounds = array<i64: 256, 128>}, {transform_indices = @transform_1, window_bounds = array<i64: 256, 128>}, {pipeline_mode = #tpu.pipeline_mode<synchronous>, transform_indices = @transform_2, window_bounds = array<i64: 8, 128>}, {transform_indices = @transform_3, window_bounds = array<i64: 256, 128>}]} {
    %c0 = arith.constant 0 : index
    %c0_0 = arith.constant 0 : index
    %0 = vector.load %arg1[%c0, %c0_0] : memref<256x128xbf16, #tpu.memory_space<vmem>>, vector<256x128xbf16>
    %1 = arith.extf %0 : vector<256x128xbf16> to vector<256x128xf32>
    %c0_1 = arith.constant 0 : index
    %c0_2 = arith.constant 0 : index
    %2 = vector.load %arg3[%c0_1, %c0_2] : memref<8x128xf32, #tpu.memory_space<vmem>>, vector<1x128xf32>
    %3 = vector.broadcast %2 : vector<1x128xf32> to vector<256x128xf32>
    %4 = arith.mulf %1, %3 : vector<256x128xf32>
    %c1 = arith.constant 1 : index
    %c0_3 = arith.constant 0 : index
    %5 = vector.load %arg3[%c1, %c0_3] : memref<8x128xf32, #tpu.memory_space<vmem>>, vector<1x128xf32>
    %6 = vector.broadcast %5 : vector<1x128xf32> to vector<256x128xf32>
    %7 = arith.addf %4, %6 : vector<256x128xf32>
    %c0_4 = arith.constant 0 : index
    %c0_5 = arith.constant 0 : index
    %8 = vector.load %arg2[%c0_4, %c0_5] : memref<256x128xbf16, #tpu.memory_space<vmem>>, vector<256x128xbf16>
    %9 = arith.extf %8 : vector<256x128xbf16> to vector<256x128xf32>
    %c2 = arith.constant 2 : index
    %c0_6 = arith.constant 0 : index
    %10 = vector.load %arg3[%c2, %c0_6] : memref<8x128xf32, #tpu.memory_space<vmem>>, vector<1x128xf32>
    %11 = vector.broadcast %10 : vector<1x128xf32> to vector<256x128xf32>
    %12 = arith.mulf %9, %11 : vector<256x128xf32>
    %13 = arith.addf %7, %12 : vector<256x128xf32>
    %c3 = arith.constant 3 : index
    %c0_7 = arith.constant 0 : index
    %14 = vector.load %arg3[%c3, %c0_7] : memref<8x128xf32, #tpu.memory_space<vmem>>, vector<1x128xf32>
    %15 = vector.broadcast %14 : vector<1x128xf32> to vector<256x128xf32>
    %16 = arith.addf %13, %15 : vector<256x128xf32>
    %cst = arith.constant 0.000000e+00 : f32
    %17 = vector.broadcast %cst : f32 to vector<256x128xf32>
    %18 = arith.maximumf %16, %17 : vector<256x128xf32>
    %c0_8 = arith.constant 0 : index
    %c0_9 = arith.constant 0 : index
    %19 = vector.load %arg4[%c0_8, %c0_9] : memref<256x128xf32, #tpu.memory_space<vmem>>, vector<256x128xf32>
    tpu.vector_store %arg4[%c0_8, %c0_9], %18 {strides = array<i32>} : memref<256x128xf32, #tpu.memory_space<vmem>>, vector<256x128xf32>,
    return
  }
  func.func @transform_0(%arg0: i32) -> (i32, i32) {
    %c0_i32 = arith.constant 0 : i32
    %c0_i32_0 = arith.constant 0 : i32
    return %arg0, %c0_i32 : i32, i32
  }
  func.func @transform_1(%arg0: i32) -> (i32, i32) {
    %c0_i32 = arith.constant 0 : i32
    %c0_i32_0 = arith.constant 0 : i32
    return %arg0, %c0_i32 : i32, i32
  }
  func.func @transform_2(%arg0: i32) -> (i32, i32) {
    %c0_i32 = arith.constant 0 : i32
    %c0_i32_0 = arith.constant 0 : i32
    %c0_i32_1 = arith.constant 0 : i32
    return %c0_i32, %c0_i32_0 : i32, i32
  }
  func.func @transform_3(%arg0: i32) -> (i32, i32) {
    %c0_i32 = arith.constant 0 : i32
    %c0_i32_0 = arith.constant 0 : i32
    return %arg0, %c0_i32 : i32, i32
  }
}

</mosaic_0001>

<llo_original>
// kernel: residual_block_forward.6
$region0: #{residual_block_forward.6}
  #allocation0 [shape = 'u32[]', space=smem, size = 0x4, offset = 0x4, fixed_abs, tag = 'smem constant byte address 0x4 - core index']
  #allocation1 [shape = 'u32[72,128]{1,0:T(1,128)}', space=vmem, size = 0x9000, scoped, tag = 'internal scratch']
  %s0 = inlined_call_operand.vmem [shape: bf16[512,128], index: 0, kind: input, shape index: {}]
  %s1 = inlined_call_operand.vmem [shape: f32[8,128], index: 1, kind: input, shape index: {}]
  %s2 = inlined_call_operand.vmem [shape: bf16[512,128], index: 2, kind: output, shape index: {}]
  %s3 = sld [smem:[#allocation0]]
  $region41: #{residual_block_forward.6} parent=0
    _
  %s5 = ssub.s32 1, %s3
  %s6 = scalar_select 0, %s5, %s3
  loop: start=0, step=1, limit=4
  $region2: #{residual_block_forward.6} parent=0 // loop_pre_header
    _
  $region3: #{residual_block_forward.6} parent=0 // loop_header
    %s8 = sphi 0, %s12
    %p9 = scmp.ge.s32.totalorder %s8, 4
    %s18 = sphi 0, %s20
    %s21 = sphi 0, %s18
    %s22 = sphi 0, %s21
    %s38 = sphi 0, %s22
    %s42 = sphi 0, %s42
    %s44 = sphi 0, %s42
    %s45 = sphi 0, %s44
    %s59 = sphi 0, %s45
    %s65 = sphi 0, %s67
    %s68 = sphi 0, %s65
    %s69 = sphi 0, %s68
    %s85 = sphi 0, %s69
  $region4: #{residual_block_forward.6} parent=0 // loop_header_branch
    %11 = sbr.rel (%p9) target = $region8
  $region5: #{residual_block_forward.6} parent=0 // loop_body
    %s13 = ssub.s32 %s8, 1
    %s14 = ssub.s32 %s8, 2
    %s15 = sadd.s32 %s8, 1
    %s16 = ssub.s32 %s8, %s15
    %p17 = scmp.eq.s32.totalorder %s16, 0
    %s19 = sadd.s32 %s18, 1
    %s20 = scalar_select %p17, %s18, %s19
    %p23 = pneg %p17
    %p24 = scmp.eq.s32.totalorder %s8, 1
    %p25 = por %p23, %p24
    %p26 = scmp.ne.s32.totalorder %s18, %s21
    %p27 = scmp.eq.s32.totalorder %s8, 0
    %p28 = por %p26, %p27
    %p29 = scmp.ne.s32.totalorder %s18, %s21
    %p30 = scmp.eq.s32.totalorder %s13, 1
    %p31 = por %p29, %p30
    %p32 = scmp.ne.s32.totalorder %s21, %s22
    %p33 = scmp.eq.s32.totalorder %s13, 0
    %p34 = por %p32, %p33
    %p35 = scmp.ne.s32.totalorder %s21, %s22
    %p36 = scmp.eq.s32.totalorder %s14, 1
    %p37 = por %p35, %p36
    %p39 = scmp.ne.s32.totalorder %s22, %s38
    %p40 = scmp.eq.s32.totalorder %s14, 0
    %p41 = por %p39, %p40
    %s43 = sadd.s32 %s42, 1
    %p46 = scmp.eq.s32.totalorder %s8, 1
    %p47 = scmp.ne.s32.totalorder %s42, %s44
    %p48 = scmp.eq.s32.totalorder %s8, 0
    %p49 = por %p47, %p48
    %p50 = scmp.ne.s32.totalorder %s42, %s44
    %p51 = scmp.eq.s32.totalorder %s13, 1
    %p52 = por %p50, %p51
    %p53 = scmp.ne.s32.totalorder %s44, %s45
    %p54 = scmp.eq.s32.totalorder %s13, 0
    %p55 = por %p53, %p54
    %p56 = scmp.ne.s32.totalorder %s44, %s45
    %p57 = scmp.eq.s32.totalorder %s14, 1
    %p58 = por %p56, %p57
    %p60 = scmp.ne.s32.totalorder %s45, %s59
    %p61 = scmp.eq.s32.totalorder %s14, 0
    %p62 = por %p60, %p61
    %s63 = ssub.s32 %s8, %s15
    %p64 = scmp.eq.s32.totalorder %s63, 0
    %s66 = sadd.s32 %s65, 1
    %s67 = scalar_select %p64, %s65, %s66
    %p70 = pneg %p64
    %p71 = scmp.eq.s32.totalorder %s8, 1
    %p72 = por %p70, %p71
    %p73 = scmp.ne.s32.totalorder %s65, %s68
    %p74 = scmp.eq.s32.totalorder %s8, 0
    %p75 = por %p73, %p74
    %p76 = scmp.ne.s32.totalorder %s65, %s68
    %p77 = scmp.eq.s32.totalorder %s13, 1
    %p78 = por %p76, %p77
    %p79 = scmp.ne.s32.totalorder %s68, %s69
    %p80 = scmp.eq.s32.totalorder %s13, 0
    %p81 = por %p79, %p80
    %p82 = scmp.ne.s32.totalorder %s68, %s69
    %p83 = scmp.eq.s32.totalorder %s14, 1
    %p84 = por %p82, %p83
    %p86 = scmp.ne.s32.totalorder %s69, %s85
    %p87 = scmp.eq.s32.totalorder %s14, 0
    %p88 = por %p86, %p87
    %p89 = scmp.le.s32.totalorder 1, %s8
    %p90 = scmp.lt.s32.totalorder %s8, 3
    %p91 = pnand %p89, %p90
    %p92 = pneg %p91
    // Predicated region
    $region9: #{residual_block_forward.6} parent=5 // pred_check
      _
    $region10: #{residual_block_forward.6} parent=5 // pred_check_branch
      %94 = sbr.rel (%p91) target = $region12
    $region11: #{residual_block_forward.6} parent=5 // pred_region
      %s95 = ssub.s32 %s8, 1
      // Predicated region
      $region13: #{residual_block_forward.6} parent=11 // pred_check
        %p96 = pneg %p55
      $region14: #{residual_block_forward.6} parent=11 // pred_check_branch
        %98 = sbr.rel (%p96) target = $region16
      $region15: #{residual_block_forward.6} parent=11 // pred_region
        _
      $region16: #{residual_block_forward.6} parent=11 // pred_fallthru
        _
    $region12: #{residual_block_forward.6} parent=5 // pred_fallthru
      _
    %p99 = scmp.lt.s32.totalorder %s8, 2
    // Predicated region
    $region17: #{residual_block_forward.6} parent=5 // pred_check
      %p100 = pneg %p99
    $region18: #{residual_block_forward.6} parent=5 // pred_check_branch
      %102 = sbr.rel (%p100) target = $region20
    $region19: #{residual_block_forward.6} parent=5 // pred_region
      // Predicated region
      $region21: #{residual_block_forward.6} parent=19 // pred_check
        %p103 = pneg %p28
      $region22: #{residual_block_forward.6} parent=19 // pred_check_branch
        %105 = sbr.rel (%p103) target = $region24
      $region23: #{residual_block_forward.6} parent=19 // pred_region
        %s106 = smul.u32 32, %s8
        %p107 = scmp.lt.s32.totalorder %s106, 63
        %s108 = scalar_select %p107, %s106, 63
        %s109 = smul.addr %s108, 4
        %s110 = scalar_lea.vmem %s0, %s109
        %s111 = smul.u32 32, %s8
      $region24: #{residual_block_forward.6} parent=19 // pred_fallthru
        _
    $region20: #{residual_block_forward.6} parent=5 // pred_fallthru
      _
    %p112 = scmp.le.s32.totalorder 1, %s8
    %p113 = scmp.lt.s32.totalorder %s8, 3
    %p114 = pnand %p112, %p113
    %p115 = pneg %p114
    // Predicated region
    $region25: #{residual_block_forward.6} parent=5 // pred_check
      _
    $region26: #{residual_block_forward.6} parent=5 // pred_check_branch
      %117 = sbr.rel (%p114) target = $region28
    $region27: #{residual_block_forward.6} parent=5 // pred_region
      %s118 = ssub.s32 %s8, 1
      %s119 = smul.u32 32, %s13
      %p120 = scmp.lt.s32.totalorder %s119, 63
      %s121 = scalar_select %p120, %s119, 63
      %s122 = smul.addr %s121, 4
      %s123 = scalar_lea.vmem %s0, %s122
      %p124 = pneg %p34
      %p125 = pneg %p31
      %p126 = pneg %p55
      %p127 = pneg %p52
      %p128 = pneg %p81
      %p129 = pneg %p78
      %s130 = smul.u32 32, %s13
      %p131 = scmp.lt.s32.totalorder %s130, 63
      %s132 = scalar_select %p131, %s130, 63
      %s133 = smul.addr %s132, 4
      %s134 = scalar_lea.vmem %s2, %s133
      %s135 = smul.u32 32, %s13
      %p136 = scmp.lt.s32.totalorder %s135, 63
      %s137 = scalar_select %p136, %s135, 63
      %s138 = smul.addr %s137, 4
      %s139 = scalar_lea.vmem %s0, %s138
      %s140 = smul.u32 32, %s13
      %s141 = smul.u32 32, %s13
      %p142 = scmp.lt.s32.totalorder %s141, 63
      %s143 = scalar_select %p142, %s141, 63
      %s144 = smul.addr %s143, 4
      %s145 = scalar_lea.vmem %s2, %s144
      %s146 = smul.u32 32, %s13
      %v147 = vld [vmem:[%s139] sm:$0xf]
      %v148 = vld [vmem:[%s139 + $0x4] sm:$0xf]
      %v149 = vld [vmem:[%s139 + $0x8] sm:$0xf]
      %v150 = vld [vmem:[%s139 + $0xc] sm:$0xf]
      %v151 = vld [vmem:[%s139 + $0x10] sm:$0xf]
      %v152 = vld [vmem:[%s139 + $0x14] sm:$0xf]
      %v153 = vld [vmem:[%s139 + $0x18] sm:$0xf]
      %v154 = vld [vmem:[%s139 + $0x1c] sm:$0xf]
      %v155 = vld [vmem:[%s139 + $0x20] sm:$0xf]
      %v156 = vld [vmem:[%s139 + $0x24] sm:$0xf]
      %v157 = vld [vmem:[%s139 + $0x28] sm:$0xf]
      %v158 = vld [vmem:[%s139 + $0x2c] sm:$0xf]
      %v159 = vld [vmem:[%s139 + $0x30] sm:$0xf]
      %v160 = vld [vmem:[%s139 + $0x34] sm:$0xf]
      %v161 = vld [vmem:[%s139 + $0x38] sm:$0xf]
      %v162 = vld [vmem:[%s139 + $0x3c] sm:$0xf]
      %v163 = vld [vmem:[%s139 + $0x40] sm:$0xf]
      %v164 = vld [vmem:[%s139 + $0x44] sm:$0xf]
      %v165 = vld [vmem:[%s139 + $0x48] sm:$0xf]
      %v166 = vld [vmem:[%s139 + $0x4c] sm:$0xf]
      %v167 = vld [vmem:[%s139 + $0x50] sm:$0xf]
      %v168 = vld [vmem:[%s139 + $0x54] sm:$0xf]
      %v169 = vld [vmem:[%s139 + $0x58] sm:$0xf]
      %v170 = vld [vmem:[%s139 + $0x5c] sm:$0xf]
      %v171 = vld [vmem:[%s139 + $0x60] sm:$0xf]
      %v172 = vld [vmem:[%s139 + $0x64] sm:$0xf]
      %v173 = vld [vmem:[%s139 + $0x68] sm:$0xf]
      %v174 = vld [vmem:[%s139 + $0x6c] sm:$0xf]
      %v175 = vld [vmem:[%s139 + $0x70] sm:$0xf]
      %v176 = vld [vmem:[%s139 + $0x74] sm:$0xf]
      %v177 = vld [vmem:[%s139 + $0x78] sm:$0xf]
      %v178 = vld [vmem:[%s139 + $0x7c] sm:$0xf]
      %v179 = vunpack.c.l.bf16 %v147
      %v180 = vunpack.c.l.bf16 %v148
      %v181 = vunpack.c.l.bf16 %v149
      %v182 = vunpack.c.l.bf16 %v150
      %v183 = vunpack.c.l.bf16 %v151
      %v184 = vunpack.c.l.bf16 %v152
      %v185 = vunpack.c.l.bf16 %v153
      %v186 = vunpack.c.l.bf16 %v154
      %v187 = vunpack.c.l.bf16 %v155
      %v188 = vunpack.c.l.bf16 %v156
      %v189 = vunpack.c.l.bf16 %v157
      %v190 = vunpack.c.l.bf16 %v158
      %v191 = vunpack.c.l.bf16 %v159
      %v192 = vunpack.c.l.bf16 %v160
      %v193 = vunpack.c.l.bf16 %v161
      %v194 = vunpack.c.l.bf16 %v162
      %v195 = vunpack.c.l.bf16 %v163
      %v196 = vunpack.c.l.bf16 %v164
      %v197 = vunpack.c.l.bf16 %v165
      %v198 = vunpack.c.l.bf16 %v166
      %v199 = vunpack.c.l.bf16 %v167
      %v200 = vunpack.c.l.bf16 %v168
      %v201 = vunpack.c.l.bf16 %v169
      %v202 = vunpack.c.l.bf16 %v170
      %v203 = vunpack.c.l.bf16 %v171
      %v204 = vunpack.c.l.bf16 %v172
      %v205 = vunpack.c.l.bf16 %v173
      %v206 = vunpack.c.l.bf16 %v174
      %v207 = vunpack.c.l.bf16 %v175
      %v208 = vunpack.c.l.bf16 %v176
      %v209 = vunpack.c.l.bf16 %v177
      %v210 = vunpack.c.l.bf16 %v178
      %v211 = vld [vmem:[%s1] sm:$0x1]
      %v212 = vperm.slane %v211, 0
      %v213 = vmul.f32 %v179, %v212
      %v214 = vmul.f32 %v180, %v212
      %v215 = vmul.f32 %v181, %v212
      %v216 = vmul.f32 %v182, %v212
      %v217 = vmul.f32 %v183, %v212
      %v218 = vmul.f32 %v184, %v212
      %v219 = vmul.f32 %v185, %v212
      %v220 = vmul.f32 %v186, %v212
      %v221 = vmul.f32 %v187, %v212
      %v222 = vmul.f32 %v188, %v212
      %v223 = vmul.f32 %v189, %v212
      %v224 = vmul.f32 %v190, %v212
      %v225 = vmul.f32 %v191, %v212
      %v226 = vmul.f32 %v192, %v212
      %v227 = vmul.f32 %v193, %v212
      %v228 = vmul.f32 %v194, %v212
      %v229 = vmul.f32 %v195, %v212
      %v230 = vmul.f32 %v196, %v212
      %v231 = vmul.f32 %v197, %v212
      %v232 = vmul.f32 %v198, %v212
      %v233 = vmul.f32 %v199, %v212
      %v234 = vmul.f32 %v200, %v212
      %v235 = vmul.f32 %v201, %v212
      %v236 = vmul.f32 %v202, %v212
      %v237 = vmul.f32 %v203, %v212
      %v238 = vmul.f32 %v204, %v212
      %v239 = vmul.f32 %v205, %v212
      %v240 = vmul.f32 %v206, %v212
      %v241 = vmul.f32 %v207, %v212
      %v242 = vmul.f32 %v208, %v212
      %v243 = vmul.f32 %v209, %v212
      %v244 = vmul.f32 %v210, %v212
      %v245 = vld [vmem:[%s1 + $0x1] sm:$0x1]
      %v246 = vperm.slane %v245, 0
      %v247 = vadd.f32 %v213, %v246
      %v248 = vadd.f32 %v214, %v246
      %v249 = vadd.f32 %v215, %v246
      %v250 = vadd.f32 %v216, %v246
      %v251 = vadd.f32 %v217, %v246
      %v252 = vadd.f32 %v218, %v246
      %v253 = vadd.f32 %v219, %v246
      %v254 = vadd.f32 %v220, %v246
      %v255 = vadd.f32 %v221, %v246
      %v256 = vadd.f32 %v222, %v246
      %v257 = vadd.f32 %v223, %v246
      %v258 = vadd.f32 %v224, %v246
      %v259 = vadd.f32 %v225, %v246
      %v260 = vadd.f32 %v226, %v246
      %v261 = vadd.f32 %v227, %v246
      %v262 = vadd.f32 %v228, %v246
      %v263 = vadd.f32 %v229, %v246
      %v264 = vadd.f32 %v230, %v246
      %v265 = vadd.f32 %v231, %v246
      %v266 = vadd.f32 %v232, %v246
      %v267 = vadd.f32 %v233, %v246
      %v268 = vadd.f32 %v234, %v246
      %v269 = vadd.f32 %v235, %v246
      %v270 = vadd.f32 %v236, %v246
      %v271 = vadd.f32 %v237, %v246
      %v272 = vadd.f32 %v238, %v246
      %v273 = vadd.f32 %v239, %v246
      %v274 = vadd.f32 %v240, %v246
      %v275 = vadd.f32 %v241, %v246
      %v276 = vadd.f32 %v242, %v246
      %v277 = vadd.f32 %v243, %v246
      %v278 = vadd.f32 %v244, %v246
      %v279 = vmax.f32 %v247, 0.0
      %v280 = vmax.f32 %v248, 0.0
      %v281 = vmax.f32 %v249, 0.0
      %v282 = vmax.f32 %v250, 0.0
      %v283 = vmax.f32 %v251, 0.0
      %v284 = vmax.f32 %v252, 0.0
      %v285 = vmax.f32 %v253, 0.0
      %v286 = vmax.f32 %v254, 0.0
      %v287 = vmax.f32 %v255, 0.0
      %v288 = vmax.f32 %v256, 0.0
      %v289 = vmax.f32 %v257, 0.0
      %v290 = vmax.f32 %v258, 0.0
      %v291 = vmax.f32 %v259, 0.0
      %v292 = vmax.f32 %v260, 0.0
      %v293 = vmax.f32 %v261, 0.0
      %v294 = vmax.f32 %v262, 0.0
      %v295 = vmax.f32 %v263, 0.0
      %v296 = vmax.f32 %v264, 0.0
      %v297 = vmax.f32 %v265, 0.0
      %v298 = vmax.f32 %v266, 0.0
      %v299 = vmax.f32 %v267, 0.0
      %v300 = vmax.f32 %v268, 0.0
      %v301 = vmax.f32 %v269, 0.0
      %v302 = vmax.f32 %v270, 0.0
      %v303 = vmax.f32 %v271, 0.0
      %v304 = vmax.f32 %v272, 0.0
      %v305 = vmax.f32 %v273, 0.0
      %v306 = vmax.f32 %v274, 0.0
      %v307 = vmax.f32 %v275, 0.0
      %v308 = vmax.f32 %v276, 0.0
      %v309 = vmax.f32 %v277, 0.0
      %v310 = vmax.f32 %v278, 0.0
      %v311 = vpack.c.bf16 %v279, %v279
      %v312 = vpack.c.bf16 %v280, %v280
      %v313 = vpack.c.bf16 %v281, %v281
      %v314 = vpack.c.bf16 %v282, %v282
      %v315 = vpack.c.bf16 %v283, %v283
      %v316 = vpack.c.bf16 %v284, %v284
      %v317 = vpack.c.bf16 %v285, %v285
      %v318 = vpack.c.bf16 %v286, %v286
      %v319 = vpack.c.bf16 %v287, %v287
      %v320 = vpack.c.bf16 %v288, %v288
      %v321 = vpack.c.bf16 %v289, %v289
      %v322 = vpack.c.bf16 %v290, %v290
      %v323 = vpack.c.bf16 %v291, %v291
      %v324 = vpack.c.bf16 %v292, %v292
      %v325 = vpack.c.bf16 %v293, %v293
      %v326 = vpack.c.bf16 %v294, %v294
      %v327 = vpack.c.bf16 %v295, %v295
      %v328 = vpack.c.bf16 %v296, %v296
      %v329 = vpack.c.bf16 %v297, %v297
      %v330 = vpack.c.bf16 %v298, %v298
      %v331 = vpack.c.bf16 %v299, %v299
      %v332 = vpack.c.bf16 %v300, %v300
      %v333 = vpack.c.bf16 %v301, %v301
      %v334 = vpack.c.bf16 %v302, %v302
      %v335 = vpack.c.bf16 %v303, %v303
      %v336 = vpack.c.bf16 %v304, %v304
      %v337 = vpack.c.bf16 %v305, %v305
      %v338 = vpack.c.bf16 %v306, %v306
      %v339 = vpack.c.bf16 %v307, %v307
      %v340 = vpack.c.bf16 %v308, %v308
      %v341 = vpack.c.bf16 %v309, %v309
      %v342 = vpack.c.bf16 %v310, %v310
      %343 = vst [vmem:[%s145] sm:$0xf] %v311
      %344 = vst [vmem:[%s145 + $0x4] sm:$0xf] %v312
      %345 = vst [vmem:[%s145 + $0x8] sm:$0xf] %v313
      %346 = vst [vmem:[%s145 + $0xc] sm:$0xf] %v314
      %347 = vst [vmem:[%s145 + $0x10] sm:$0xf] %v315
      %348 = vst [vmem:[%s145 + $0x14] sm:$0xf] %v316
      %349 = vst [vmem:[%s145 + $0x18] sm:$0xf] %v317
      %350 = vst [vmem:[%s145 + $0x1c] sm:$0xf] %v318
      %351 = vst [vmem:[%s145 + $0x20] sm:$0xf] %v319
      %352 = vst [vmem:[%s145 + $0x24] sm:$0xf] %v320
      %353 = vst [vmem:[%s145 + $0x28] sm:$0xf] %v321
      %354 = vst [vmem:[%s145 + $0x2c] sm:$0xf] %v322
      %355 = vst [vmem:[%s145 + $0x30] sm:$0xf] %v323
      %356 = vst [vmem:[%s145 + $0x34] sm:$0xf] %v324
      %357 = vst [vmem:[%s145 + $0x38] sm:$0xf] %v325
      %358 = vst [vmem:[%s145 + $0x3c] sm:$0xf] %v326
      %359 = vst [vmem:[%s145 + $0x40] sm:$0xf] %v327
      %360 = vst [vmem:[%s145 + $0x44] sm:$0xf] %v328
      %361 = vst [vmem:[%s145 + $0x48] sm:$0xf] %v329
      %362 = vst [vmem:[%s145 + $0x4c] sm:$0xf] %v330
      %363 = vst [vmem:[%s145 + $0x50] sm:$0xf] %v331
      %364 = vst [vmem:[%s145 + $0x54] sm:$0xf] %v332
      %365 = vst [vmem:[%s145 + $0x58] sm:$0xf] %v333
      %366 = vst [vmem:[%s145 + $0x5c] sm:$0xf] %v334
      %367 = vst [vmem:[%s145 + $0x60] sm:$0xf] %v335
      %368 = vst [vmem:[%s145 + $0x64] sm:$0xf] %v336
      %369 = vst [vmem:[%s145 + $0x68] sm:$0xf] %v337
      %370 = vst [vmem:[%s145 + $0x6c] sm:$0xf] %v338
      %371 = vst [vmem:[%s145 + $0x70] sm:$0xf] %v339
      %372 = vst [vmem:[%s145 + $0x74] sm:$0xf] %v340
      %373 = vst [vmem:[%s145 + $0x78] sm:$0xf] %v341
      %374 = vst [vmem:[%s145 + $0x7c] sm:$0xf] %v342
      %s375 = smul.u32 32, %s13
      %p376 = scmp.lt.s32.totalorder %s375, 63
      %s377 = scalar_select %p376, %s375, 63
      %s378 = smul.addr %s377, 4
      %s379 = scalar_lea.vmem %s2, %s378
      // Predicated region
      $region29: #{residual_block_forward.6} parent=27 // pred_check
        %p380 = pneg %p78
      $region30: #{residual_block_forward.6} parent=27 // pred_check_branch
        %382 = sbr.rel (%p380) target = $region32
      $region31: #{residual_block_forward.6} parent=27 // pred_region
        %s383 = smul.u32 32, %s13
      $region32: #{residual_block_forward.6} parent=27 // pred_fallthru
        _
    $region28: #{residual_block_forward.6} parent=5 // pred_fallthru
      _
    %p384 = scmp.le.s32.totalorder 2, %s8
    // Predicated region
    $region33: #{residual_block_forward.6} parent=5 // pred_check
      %p385 = pneg %p384
    $region34: #{residual_block_forward.6} parent=5 // pred_check_branch
      %387 = sbr.rel (%p385) target = $region36
    $region35: #{residual_block_forward.6} parent=5 // pred_region
      %s388 = ssub.s32 %s8, 2
      // Predicated region
      $region37: #{residual_block_forward.6} parent=35 // pred_check
        %p389 = pneg %p84
      $region38: #{residual_block_forward.6} parent=35 // pred_check_branch
        %391 = sbr.rel (%p389) target = $region40
      $region39: #{residual_block_forward.6} parent=35 // pred_region
        %s392 = smul.u32 32, %s14
        %p393 = scmp.lt.s32.totalorder %s392, 63
        %s394 = scalar_select %p393, %s392, 63
        %s395 = smul.addr %s394, 4
        %s396 = scalar_lea.vmem %s2, %s395
      $region40: #{residual_block_forward.6} parent=35 // pred_fallthru
        _
    $region36: #{residual_block_forward.6} parent=5 // pred_fallthru
      _
  $region6: #{residual_block_forward.6} parent=0 // loop_footer
    %s12 = sadd.s32 1, %s8
  $region7: #{residual_block_forward.6} parent=0 // loop_footer_branch
    %7 = sbr.rel target = $region3
  $region8: #{residual_block_forward.6} parent=0 // loop_exit
    _

// kernel: residual_block_forward.5
$region0: #{residual_block_forward.5}
  #allocation0 [shape = 'u32[]', space=smem, size = 0x4, offset = 0x4, fixed_abs, tag = 'smem constant byte address 0x4 - core index']
  #allocation1 [shape = 'u32[72,128]{1,0:T(1,128)}', space=vmem, size = 0x9000, scoped, tag = 'internal scratch']
  %s0 = inlined_call_operand.vmem [shape: bf16[512,128], index: 0, kind: input, shape index: {}]
  %s1 = inlined_call_operand.vmem [shape: bf16[128,128], index: 1, kind: input, shape index: {}]
  %s2 = inlined_call_operand.vmem [shape: bf16[512,128], index: 2, kind: output, shape index: {0}]
  %s3 = inlined_call_operand.vmem [shape: f32[16,128], index: 3, kind: output, shape index: {1}]
  %4 = xla_tuple %s2, %s3
  %s5 = sld [smem:[#allocation0]]
  $region49: #{residual_block_forward.5} parent=0
    _
  %s7 = ssub.s32 1, %s5
  %s8 = scalar_select 0, %s7, %s5
  loop: start=0, step=1, limit=4
  $region2: #{residual_block_forward.5} parent=0 // loop_pre_header
    _
  $region3: #{residual_block_forward.5} parent=0 // loop_header
    %s10 = sphi 0, %s14
    %p11 = scmp.ge.s32.totalorder %s10, 4
    %s17 = sphi 0, %s29
    %s18 = sphi 0, %s25
    %s19 = sphi 0, %s17
    %s20 = sphi 0, %s18
    %s21 = sphi 0, %s19
    %s22 = sphi 0, %s20
    %s32 = sphi 0, %s34
    %s35 = sphi 0, %s32
    %s36 = sphi 0, %s35
    %s52 = sphi 0, %s36
    %s58 = sphi 0, %s60
    %s61 = sphi 0, %s58
    %s62 = sphi 0, %s61
    %s78 = sphi 0, %s62
    %s86 = sphi 0, %s88
    %s89 = sphi 0, %s86
    %s90 = sphi 0, %s89
    %s106 = sphi 0, %s90
    %s114 = sphi 0, %s116
    %s117 = sphi 0, %s114
    %s118 = sphi 0, %s117
    %s134 = sphi 0, %s118
  $region4: #{residual_block_forward.5} parent=0 // loop_header_branch
    %13 = sbr.rel (%p11) target = $region8
  $region5: #{residual_block_forward.5} parent=0 // loop_body
    %s15 = ssub.s32 %s10, 1
    %s16 = ssub.s32 %s10, 2
    %s23 = sadd.s32 1, %s18
    %p24 = scmp.ge.s32.totalorder %s23, 1
    %s25 = scalar_select %p24, 0, %s23
    %s26 = sadd.s32 1, %s17
    %s27 = scalar_select %p24, %s26, %s17
    %p28 = scmp.ge.s32.totalorder %s27, 2
    %s29 = scalar_select %p28, 0, %s27
    %s30 = ssub.s32 %s17, %s29
    %p31 = scmp.eq.s32.totalorder %s30, 0
    %s33 = sadd.s32 %s32, 1
    %s34 = scalar_select %p31, %s32, %s33
    %p37 = pneg %p31
    %p38 = scmp.eq.s32.totalorder %s10, 1
    %p39 = por %p37, %p38
    %p40 = scmp.ne.s32.totalorder %s32, %s35
    %p41 = scmp.eq.s32.totalorder %s10, 0
    %p42 = por %p40, %p41
    %p43 = scmp.ne.s32.totalorder %s32, %s35
    %p44 = scmp.eq.s32.totalorder %s15, 1
    %p45 = por %p43, %p44
    %p46 = scmp.ne.s32.totalorder %s35, %s36
    %p47 = scmp.eq.s32.totalorder %s15, 0
    %p48 = por %p46, %p47
    %p49 = scmp.ne.s32.totalorder %s35, %s36
    %p50 = scmp.eq.s32.totalorder %s16, 1
    %p51 = por %p49, %p50
    %p53 = scmp.ne.s32.totalorder %s36, %s52
    %p54 = scmp.eq.s32.totalorder %s16, 0
    %p55 = por %p53, %p54
    %s56 = ssub.s32 %s18, %s25
    %p57 = scmp.eq.s32.totalorder %s56, 0
    %s59 = sadd.s32 %s58, 1
    %s60 = scalar_select %p57, %s58, %s59
    %p63 = pneg %p57
    %p64 = scmp.eq.s32.totalorder %s10, 1
    %p65 = por %p63, %p64
    %p66 = scmp.ne.s32.totalorder %s58, %s61
    %p67 = scmp.eq.s32.totalorder %s10, 0
    %p68 = por %p66, %p67
    %p69 = scmp.ne.s32.totalorder %s58, %s61
    %p70 = scmp.eq.s32.totalorder %s15, 1
    %p71 = por %p69, %p70
    %p72 = scmp.ne.s32.totalorder %s61, %s62
    %p73 = scmp.eq.s32.totalorder %s15, 0
    %p74 = por %p72, %p73
    %p75 = scmp.ne.s32.totalorder %s61, %s62
    %p76 = scmp.eq.s32.totalorder %s16, 1
    %p77 = por %p75, %p76
    %p79 = scmp.ne.s32.totalorder %s62, %s78
    %p80 = scmp.eq.s32.totalorder %s16, 0
    %p81 = por %p79, %p80
    %s82 = ssub.s32 %s17, %s29
    %s83 = ssub.s32 %s18, %s25
    %s84 = sor.u32 %s82, %s83
    %p85 = scmp.eq.s32.totalorder %s84, 0
    %s87 = sadd.s32 %s86, 1
    %s88 = scalar_select %p85, %s86, %s87
    %p91 = pneg %p85
    %p92 = scmp.eq.s32.totalorder %s10, 1
    %p93 = por %p91, %p92
    %p94 = scmp.ne.s32.totalorder %s86, %s89
    %p95 = scmp.eq.s32.totalorder %s10, 0
    %p96 = por %p94, %p95
    %p97 = scmp.ne.s32.totalorder %s86, %s89
    %p98 = scmp.eq.s32.totalorder %s15, 1
    %p99 = por %p97, %p98
    %p100 = scmp.ne.s32.totalorder %s89, %s90
    %p101 = scmp.eq.s32.totalorder %s15, 0
    %p102 = por %p100, %p101
    %p103 = scmp.ne.s32.totalorder %s89, %s90
    %p104 = scmp.eq.s32.totalorder %s16, 1
    %p105 = por %p103, %p104
    %p107 = scmp.ne.s32.totalorder %s90, %s106
    %p108 = scmp.eq.s32.totalorder %s16, 0
    %p109 = por %p107, %p108
    %s110 = ssub.s32 %s17, %s29
    %s111 = ssub.s32 %s18, %s25
    %s112 = sor.u32 %s110, %s111
    %p113 = scmp.eq.s32.totalorder %s112, 0
    %s115 = sadd.s32 %s114, 1
    %s116 = scalar_select %p113, %s114, %s115
    %p119 = pneg %p113
    %p120 = scmp.eq.s32.totalorder %s10, 1
    %p121 = por %p119, %p120
    %p122 = scmp.ne.s32.totalorder %s114, %s117
    %p123 = scmp.eq.s32.totalorder %s10, 0
    %p124 = por %p122, %p123
    %p125 = scmp.ne.s32.totalorder %s114, %s117
    %p126 = scmp.eq.s32.totalorder %s15, 1
    %p127 = por %p125, %p126
    %p128 = scmp.ne.s32.totalorder %s117, %s118
    %p129 = scmp.eq.s32.totalorder %s15, 0
    %p130 = por %p128, %p129
    %p131 = scmp.ne.s32.totalorder %s117, %s118
    %p132 = scmp.eq.s32.totalorder %s16, 1
    %p133 = por %p131, %p132
    %p135 = scmp.ne.s32.totalorder %s118, %s134
    %p136 = scmp.eq.s32.totalorder %s16, 0
    %p137 = por %p135, %p136
    %p138 = scmp.le.s32.totalorder 1, %s10
    %p139 = scmp.lt.s32.totalorder %s10, 3
    %p140 = pnand %p138, %p139
    %p141 = pneg %p140
    // Predicated region
    $region9: #{residual_block_forward.5} parent=5 // pred_check
      _
    $region10: #{residual_block_forward.5} parent=5 // pred_check_branch
      %143 = sbr.rel (%p140) target = $region12
    $region11: #{residual_block_forward.5} parent=5 // pred_region
      %s144 = ssub.s32 %s10, 1
      // Predicated region
      $region13: #{residual_block_forward.5} parent=11 // pred_check
        %p145 = pneg %p74
      $region14: #{residual_block_forward.5} parent=11 // pred_check_branch
        %147 = sbr.rel (%p145) target = $region16
      $region15: #{residual_block_forward.5} parent=11 // pred_region
        %p148 = scmp.lt.s32.totalorder %s20, 0
        %s149 = scalar_select %p148, %s20, 0
        %s150 = smul.addr %s149, 4
        %s151 = scalar_lea.vmem %s1, %s150
      $region16: #{residual_block_forward.5} parent=11 // pred_fallthru
        _
    $region12: #{residual_block_forward.5} parent=5 // pred_fallthru
      _
    %p152 = scmp.lt.s32.totalorder %s10, 2
    // Predicated region
    $region17: #{residual_block_forward.5} parent=5 // pred_check
      %p153 = pneg %p152
    $region18: #{residual_block_forward.5} parent=5 // pred_check_branch
      %155 = sbr.rel (%p153) target = $region20
    $region19: #{residual_block_forward.5} parent=5 // pred_region
      // Predicated region
      $region21: #{residual_block_forward.5} parent=19 // pred_check
        %p156 = pneg %p42
      $region22: #{residual_block_forward.5} parent=19 // pred_check_branch
        %158 = sbr.rel (%p156) target = $region24
      $region23: #{residual_block_forward.5} parent=19 // pred_region
        %s159 = smul.u32 32, %s17
        %p160 = scmp.lt.s32.totalorder %s159, 63
        %s161 = scalar_select %p160, %s159, 63
        %s162 = smul.addr %s161, 4
        %s163 = scalar_lea.vmem %s0, %s162
        %s164 = smul.u32 32, %s17
      $region24: #{residual_block_forward.5} parent=19 // pred_fallthru
        _
    $region20: #{residual_block_forward.5} parent=5 // pred_fallthru
      _
    %p165 = scmp.le.s32.totalorder 1, %s10
    %p166 = scmp.lt.s32.totalorder %s10, 3
    %p167 = pnand %p165, %p166
    %p168 = pneg %p167
    // Predicated region
    $region25: #{residual_block_forward.5} parent=5 // pred_check
      _
    $region26: #{residual_block_forward.5} parent=5 // pred_check_branch
      %170 = sbr.rel (%p167) target = $region28
    $region27: #{residual_block_forward.5} parent=5 // pred_region
      %s171 = ssub.s32 %s10, 1
      %s172 = smul.u32 32, %s19
      %p173 = scmp.lt.s32.totalorder %s172, 63
      %s174 = scalar_select %p173, %s172, 63
      %s175 = smul.addr %s174, 4
      %s176 = scalar_lea.vmem %s0, %s175
      %p177 = pneg %p48
      %p178 = pneg %p45
      %p179 = scmp.lt.s32.totalorder %s20, 0
      %s180 = scalar_select %p179, %s20, 0
      %s181 = smul.addr %s180, 4
      %s182 = scalar_lea.vmem %s1, %s181
      %p183 = pneg %p74
      %p184 = pneg %p71
      %p185 = pneg %p102
      %p186 = pneg %p99
      %s187 = smul.u32 32, %s19
      %p188 = scmp.lt.s32.totalorder %s187, 63
      %s189 = scalar_select %p188, %s187, 63
      %p190 = scmp.lt.s32.totalorder %s20, 0
      %s191 = scalar_select %p190, %s20, 0
      %s192 = sadd.s32 %s191, %s189
      %s193 = smul.addr %s192, 4
      %s194 = scalar_lea.vmem %s2, %s193
      %p195 = pneg %p130
      %p196 = pneg %p127
      %p197 = scmp.lt.s32.totalorder %s19, 1
      %s198 = scalar_select %p197, %s19, 1
      %p199 = scmp.lt.s32.totalorder %s20, 0
      %s200 = scalar_select %p199, %s20, 0
      %s201 = sadd.s32 %s200, %s198
      %s202 = smul.addr %s201, 8
      %s203 = scalar_lea.vmem %s3, %s202
      %s204 = smul.u32 32, %s19
      %p205 = scmp.lt.s32.totalorder %s204, 63
      %s206 = scalar_select %p205, %s204, 63
      %s207 = smul.addr %s206, 4
      %s208 = scalar_lea.vmem %s0, %s207
      %s209 = smul.u32 32, %s19
      %p210 = scmp.lt.s32.totalorder %s20, 0
      %s211 = scalar_select %p210, %s20, 0
      %s212 = smul.addr %s211, 4
      %s213 = scalar_lea.vmem %s1, %s212
      %s214 = smul.u32 32, %s19
      %p215 = scmp.lt.s32.totalorder %s214, 63
      %s216 = scalar_select %p215, %s214, 63
      %p217 = scmp.lt.s32.totalorder %s20, 0
      %s218 = scalar_select %p217, %s20, 0
      %s219 = sadd.s32 %s218, %s216
      %s220 = smul.addr %s219, 4
      %s221 = scalar_lea.vmem %s2, %s220
      %s222 = smul.u32 32, %s19
      %p223 = scmp.lt.s32.totalorder %s19, 1
      %s224 = scalar_select %p223, %s19, 1
      %p225 = scmp.lt.s32.totalorder %s20, 0
      %s226 = scalar_select %p225, %s20, 0
      %s227 = sadd.s32 %s226, %s224
      %s228 = smul.addr %s227, 8
      %s229 = scalar_lea.vmem %s3, %s228
      %v230 = vld [vmem:[%s208] sm:$0xf]
      %v231 = vld [vmem:[%s208 + $0x4] sm:$0xf]
      %v232 = vld [vmem:[%s208 + $0x8] sm:$0xf]
      %v233 = vld [vmem:[%s208 + $0xc] sm:$0xf]
      %v234 = vld [vmem:[%s208 + $0x10] sm:$0xf]
      %v235 = vld [vmem:[%s208 + $0x14] sm:$0xf]
      %v236 = vld [vmem:[%s208 + $0x18] sm:$0xf]
      %v237 = vld [vmem:[%s208 + $0x1c] sm:$0xf]
      %v238 = vld [vmem:[%s208 + $0x20] sm:$0xf]
      %v239 = vld [vmem:[%s208 + $0x24] sm:$0xf]
      %v240 = vld [vmem:[%s208 + $0x28] sm:$0xf]
      %v241 = vld [vmem:[%s208 + $0x2c] sm:$0xf]
      %v242 = vld [vmem:[%s208 + $0x30] sm:$0xf]
      %v243 = vld [vmem:[%s208 + $0x34] sm:$0xf]
      %v244 = vld [vmem:[%s208 + $0x38] sm:$0xf]
      %v245 = vld [vmem:[%s208 + $0x3c] sm:$0xf]
      %v246 = vld [vmem:[%s208 + $0x40] sm:$0xf]
      %v247 = vld [vmem:[%s208 + $0x44] sm:$0xf]
      %v248 = vld [vmem:[%s208 + $0x48] sm:$0xf]
      %v249 = vld [vmem:[%s208 + $0x4c] sm:$0xf]
      %v250 = vld [vmem:[%s208 + $0x50] sm:$0xf]
      %v251 = vld [vmem:[%s208 + $0x54] sm:$0xf]
      %v252 = vld [vmem:[%s208 + $0x58] sm:$0xf]
      %v253 = vld [vmem:[%s208 + $0x5c] sm:$0xf]
      %v254 = vld [vmem:[%s208 + $0x60] sm:$0xf]
      %v255 = vld [vmem:[%s208 + $0x64] sm:$0xf]
      %v256 = vld [vmem:[%s208 + $0x68] sm:$0xf]
      %v257 = vld [vmem:[%s208 + $0x6c] sm:$0xf]
      %v258 = vld [vmem:[%s208 + $0x70] sm:$0xf]
      %v259 = vld [vmem:[%s208 + $0x74] sm:$0xf]
      %v260 = vld [vmem:[%s208 + $0x78] sm:$0xf]
      %v261 = vld [vmem:[%s208 + $0x7c] sm:$0xf]
      %v262 = vld [vmem:[%s213] sm:$0xf]
      %v263 = vld [vmem:[%s213 + $0x4] sm:$0xf]
      %v264 = vld [vmem:[%s213 + $0x8] sm:$0xf]
      %v265 = vld [vmem:[%s213 + $0xc] sm:$0xf]
      %v266 = vld [vmem:[%s213 + $0x10] sm:$0xf]
      %v267 = vld [vmem:[%s213 + $0x14] sm:$0xf]
      %v268 = vld [vmem:[%s213 + $0x18] sm:$0xf]
      %v269 = vld [vmem:[%s213 + $0x1c] sm:$0xf]
      %v270 = vld [vmem:[%s213 + $0x20] sm:$0xf]
      %v271 = vld [vmem:[%s213 + $0x24] sm:$0xf]
      %v272 = vld [vmem:[%s213 + $0x28] sm:$0xf]
      %v273 = vld [vmem:[%s213 + $0x2c] sm:$0xf]
      %v274 = vld [vmem:[%s213 + $0x30] sm:$0xf]
      %v275 = vld [vmem:[%s213 + $0x34] sm:$0xf]
      %v276 = vld [vmem:[%s213 + $0x38] sm:$0xf]
      %v277 = vld [vmem:[%s213 + $0x3c] sm:$0xf]
      %v310 = vunpack.c.l.b16 %v230
      %v311 = vunpack.c.l.b16 %v231
      %v312 = vunpack.c.l.b16 %v232
      %v313 = vunpack.c.l.b16 %v233
      %v314 = vunpack.c.l.b16 %v234
      %v315 = vunpack.c.l.b16 %v235
      %v316 = vunpack.c.l.b16 %v236
      %v317 = vunpack.c.l.b16 %v237
      %v318 = vunpack.c.l.b16 %v238
      %v319 = vunpack.c.l.b16 %v239
      %v320 = vunpack.c.l.b16 %v240
      %v321 = vunpack.c.l.b16 %v241
      %v322 = vunpack.c.l.b16 %v242
      %v323 = vunpack.c.l.b16 %v243
      %v324 = vunpack.c.l.b16 %v244
      %v325 = vunpack.c.l.b16 %v245
      %v326 = vunpack.c.l.b16 %v246
      %v327 = vunpack.c.l.b16 %v247
      %v328 = vunpack.c.l.b16 %v248
      %v329 = vunpack.c.l.b16 %v249
      %v330 = vunpack.c.l.b16 %v250
      %v331 = vunpack.c.l.b16 %v251
      %v332 = vunpack.c.l.b16 %v252
      %v333 = vunpack.c.l.b16 %v253
      %v334 = vunpack.c.l.b16 %v254
      %v335 = vunpack.c.l.b16 %v255
      %v336 = vunpack.c.l.b16 %v256
      %v337 = vunpack.c.l.b16 %v257
      %v338 = vunpack.c.l.b16 %v258
      %v339 = vunpack.c.l.b16 %v259
      %v340 = vunpack.c.l.b16 %v260
      %v341 = vunpack.c.l.b16 %v261
      %v342 = vpack.c.b16 %v311, %v310
      %v343 = vpack.c.b16 %v313, %v312
      %v344 = vpack.c.b16 %v315, %v314
      %v345 = vpack.c.b16 %v317, %v316
      %v346 = vpack.c.b16 %v319, %v318
      %v347 = vpack.c.b16 %v321, %v320
      %v348 = vpack.c.b16 %v323, %v322
      %v349 = vpack.c.b16 %v325, %v324
      %v350 = vpack.c.b16 %v327, %v326
      %v351 = vpack.c.b16 %v329, %v328
      %v352 = vpack.c.b16 %v331, %v330
      %v353 = vpack.c.b16 %v333, %v332
      %v354 = vpack.c.b16 %v335, %v334
      %v355 = vpack.c.b16 %v337, %v336
      %v356 = vpack.c.b16 %v339, %v338
      %v357 = vpack.c.b16 %v341, %v340
      %v390 = vunpack.c.l.b16 %v262
      %v391 = vunpack.c.l.b16 %v263
      %v392 = vunpack.c.l.b16 %v264
      %v393 = vunpack.c.l.b16 %v265
      %v394 = vunpack.c.l.b16 %v266
      %v395 = vunpack.c.l.b16 %v267
      %v396 = vunpack.c.l.b16 %v268
      %v397 = vunpack.c.l.b16 %v269
      %v398 = vunpack.c.l.b16 %v270
      %v399 = vunpack.c.l.b16 %v271
      %v400 = vunpack.c.l.b16 %v272
      %v401 = vunpack.c.l.b16 %v273
      %v402 = vunpack.c.l.b16 %v274
      %v403 = vunpack.c.l.b16 %v275
      %v404 = vunpack.c.l.b16 %v276
      %v405 = vunpack.c.l.b16 %v277
      %v406 = vpack.c.b16 %v391, %v390
      %v407 = vpack.c.b16 %v393, %v392
      %v408 = vpack.c.b16 %v395, %v394
      %v409 = vpack.c.b16 %v397, %v396
      %v410 = vpack.c.b16 %v399, %v398
      %v411 = vpack.c.b16 %v401, %v400
      %v412 = vpack.c.b16 %v403, %v402
      %v413 = vpack.c.b16 %v405, %v404
      %422 = vmatpush.bf16.msra.mxu0 %v413
      %423 = vmatpush.bf16.msra.mxu0 %v412
      %424 = vmatpush.bf16.msra.mxu0 %v411
      %425 = vmatpush.bf16.msra.mxu0 %v410
      %426 = vmatpush.bf16.msra.mxu0 %v409
      %427 = vmatpush.bf16.msra.mxu0 %v408
      %428 = vmatpush.bf16.msra.mxu0 %v407
      %429 = vmatpush.bf16.msra.mxu0 %v406
      %430 = vmatmul.bf16.gmra.mxu0 %v342
      %v431 = vpop.f32.mrf.mxu0
      %v432 = vadd.f32 0.0, %v431
      %v433 = vpop.f32.mrf.mxu0
      %v434 = vadd.f32 0.0, %v433
      %435 = vmatmul.bf16.gmra.mxu0 %v343
      %v436 = vpop.f32.mrf.mxu0
      %v437 = vadd.f32 0.0, %v436
      %v438 = vpop.f32.mrf.mxu0
      %v439 = vadd.f32 0.0, %v438
      %440 = vmatmul.bf16.gmra.mxu0 %v344
      %v441 = vpop.f32.mrf.mxu0
      %v442 = vadd.f32 0.0, %v441
      %v443 = vpop.f32.mrf.mxu0
      %v444 = vadd.f32 0.0, %v443
      %445 = vmatmul.bf16.gmra.mxu0 %v345
      %v446 = vpop.f32.mrf.mxu0
      %v447 = vadd.f32 0.0, %v446
      %v448 = vpop.f32.mrf.mxu0
      %v449 = vadd.f32 0.0, %v448
      %450 = vmatmul.bf16.gmra.mxu0 %v346
      %v451 = vpop.f32.mrf.mxu0
      %v452 = vadd.f32 0.0, %v451
      %v453 = vpop.f32.mrf.mxu0
      %v454 = vadd.f32 0.0, %v453
      %455 = vmatmul.bf16.gmra.mxu0 %v347
      %v456 = vpop.f32.mrf.mxu0
      %v457 = vadd.f32 0.0, %v456
      %v458 = vpop.f32.mrf.mxu0
      %v459 = vadd.f32 0.0, %v458
      %460 = vmatmul.bf16.gmra.mxu0 %v348
      %v461 = vpop.f32.mrf.mxu0
      %v462 = vadd.f32 0.0, %v461
      %v463 = vpop.f32.mrf.mxu0
      %v464 = vadd.f32 0.0, %v463
      %465 = vmatmul.bf16.gmra.mxu0 %v349
      %v466 = vpop.f32.mrf.mxu0
      %v467 = vadd.f32 0.0, %v466
      %v468 = vpop.f32.mrf.mxu0
      %v469 = vadd.f32 0.0, %v468
      %470 = vmatmul.bf16.gmra.mxu0 %v350
      %v471 = vpop.f32.mrf.mxu0
      %v472 = vadd.f32 0.0, %v471
      %v473 = vpop.f32.mrf.mxu0
      %v474 = vadd.f32 0.0, %v473
      %475 = vmatmul.bf16.gmra.mxu0 %v351
      %v476 = vpop.f32.mrf.mxu0
      %v477 = vadd.f32 0.0, %v476
      %v478 = vpop.f32.mrf.mxu0
      %v479 = vadd.f32 0.0, %v478
      %480 = vmatmul.bf16.gmra.mxu0 %v352
      %v481 = vpop.f32.mrf.mxu0
      %v482 = vadd.f32 0.0, %v481
      %v483 = vpop.f32.mrf.mxu0
      %v484 = vadd.f32 0.0, %v483
      %485 = vmatmul.bf16.gmra.mxu0 %v353
      %v486 = vpop.f32.mrf.mxu0
      %v487 = vadd.f32 0.0, %v486
      %v488 = vpop.f32.mrf.mxu0
      %v489 = vadd.f32 0.0, %v488
      %490 = vmatmul.bf16.gmra.mxu0 %v354
      %v491 = vpop.f32.mrf.mxu0
      %v492 = vadd.f32 0.0, %v491
      %v493 = vpop.f32.mrf.mxu0
      %v494 = vadd.f32 0.0, %v493
      %495 = vmatmul.bf16.gmra.mxu0 %v355
      %v496 = vpop.f32.mrf.mxu0
      %v497 = vadd.f32 0.0, %v496
      %v498 = vpop.f32.mrf.mxu0
      %v499 = vadd.f32 0.0, %v498
      %500 = vmatmul.bf16.gmra.mxu0 %v356
      %v501 = vpop.f32.mrf.mxu0
      %v502 = vadd.f32 0.0, %v501
      %v503 = vpop.f32.mrf.mxu0
      %v504 = vadd.f32 0.0, %v503
      %505 = vmatmul.bf16.gmra.mxu0 %v357
      %v506 = vpop.f32.mrf.mxu0
      %v507 = vadd.f32 0.0, %v506
      %v508 = vpop.f32.mrf.mxu0
      %v509 = vadd.f32 0.0, %v508
      %510 = vdwg.mxu0
      %v511 = vpack.c.bf16 %v432, %v432
      %v512 = vpack.c.bf16 %v434, %v434
      %v513 = vpack.c.bf16 %v437, %v437
      %v514 = vpack.c.bf16 %v439, %v439
      %v515 = vpack.c.bf16 %v442, %v442
      %v516 = vpack.c.bf16 %v444, %v444
      %v517 = vpack.c.bf16 %v447, %v447
      %v518 = vpack.c.bf16 %v449, %v449
      %v519 = vpack.c.bf16 %v452, %v452
      %v520 = vpack.c.bf16 %v454, %v454
      %v521 = vpack.c.bf16 %v457, %v457
      %v522 = vpack.c.bf16 %v459, %v459
      %v523 = vpack.c.bf16 %v462, %v462
      %v524 = vpack.c.bf16 %v464, %v464
      %v525 = vpack.c.bf16 %v467, %v467
      %v526 = vpack.c.bf16 %v469, %v469
      %v527 = vpack.c.bf16 %v472, %v472
      %v528 = vpack.c.bf16 %v474, %v474
      %v529 = vpack.c.bf16 %v477, %v477
      %v530 = vpack.c.bf16 %v479, %v479
      %v531 = vpack.c.bf16 %v482, %v482
      %v532 = vpack.c.bf16 %v484, %v484
      %v533 = vpack.c.bf16 %v487, %v487
      %v534 = vpack.c.bf16 %v489, %v489
      %v535 = vpack.c.bf16 %v492, %v492
      %v536 = vpack.c.bf16 %v494, %v494
      %v537 = vpack.c.bf16 %v497, %v497
      %v538 = vpack.c.bf16 %v499, %v499
      %v539 = vpack.c.bf16 %v502, %v502
      %v540 = vpack.c.bf16 %v504, %v504
      %v541 = vpack.c.bf16 %v507, %v507
      %v542 = vpack.c.bf16 %v509, %v509
      %543 = vst [vmem:[%s221] sm:$0xf] %v511
      %544 = vst [vmem:[%s221 + $0x4] sm:$0xf] %v512
      %545 = vst [vmem:[%s221 + $0x8] sm:$0xf] %v513
      %546 = vst [vmem:[%s221 + $0xc] sm:$0xf] %v514
      %547 = vst [vmem:[%s221 + $0x10] sm:$0xf] %v515
      %548 = vst [vmem:[%s221 + $0x14] sm:$0xf] %v516
      %549 = vst [vmem:[%s221 + $0x18] sm:$0xf] %v517
      %550 = vst [vmem:[%s221 + $0x1c] sm:$0xf] %v518
      %551 = vst [vmem:[%s221 + $0x20] sm:$0xf] %v519
      %552 = vst [vmem:[%s221 + $0x24] sm:$0xf] %v520
      %553 = vst [vmem:[%s221 + $0x28] sm:$0xf] %v521
      %554 = vst [vmem:[%s221 + $0x2c] sm:$0xf] %v522
      %555 = vst [vmem:[%s221 + $0x30] sm:$0xf] %v523
      %556 = vst [vmem:[%s221 + $0x34] sm:$0xf] %v524
      %557 = vst [vmem:[%s221 + $0x38] sm:$0xf] %v525
      %558 = vst [vmem:[%s221 + $0x3c] sm:$0xf] %v526
      %559 = vst [vmem:[%s221 + $0x40] sm:$0xf] %v527
      %560 = vst [vmem:[%s221 + $0x44] sm:$0xf] %v528
      %561 = vst [vmem:[%s221 + $0x48] sm:$0xf] %v529
      %562 = vst [vmem:[%s221 + $0x4c] sm:$0xf] %v530
      %563 = vst [vmem:[%s221 + $0x50] sm:$0xf] %v531
      %564 = vst [vmem:[%s221 + $0x54] sm:$0xf] %v532
      %565 = vst [vmem:[%s221 + $0x58] sm:$0xf] %v533
      %566 = vst [vmem:[%s221 + $0x5c] sm:$0xf] %v534
      %567 = vst [vmem:[%s221 + $0x60] sm:$0xf] %v535
      %568 = vst [vmem:[%s221 + $0x64] sm:$0xf] %v536
      %569 = vst [vmem:[%s221 + $0x68] sm:$0xf] %v537
      %570 = vst [vmem:[%s221 + $0x6c] sm:$0xf] %v538
      %571 = vst [vmem:[%s221 + $0x70] sm:$0xf] %v539
      %572 = vst [vmem:[%s221 + $0x74] sm:$0xf] %v540
      %573 = vst [vmem:[%s221 + $0x78] sm:$0xf] %v541
      %574 = vst [vmem:[%s221 + $0x7c] sm:$0xf] %v542
      %v575 = vadd.f32 %v432, %v434
      %v576 = vadd.f32 %v575, %v437
      %v577 = vadd.f32 %v576, %v439
      %v578 = vadd.f32 %v577, %v442
      %v579 = vadd.f32 %v578, %v444
      %v580 = vadd.f32 %v579, %v447
      %v581 = vadd.f32 %v580, %v449
      %v582 = vadd.f32 %v581, %v452
      %v583 = vadd.f32 %v582, %v454
      %v584 = vadd.f32 %v583, %v457
      %v585 = vadd.f32 %v584, %v459
      %v586 = vadd.f32 %v585, %v462
      %v587 = vadd.f32 %v586, %v464
      %v588 = vadd.f32 %v587, %v467
      %v589 = vadd.f32 %v588, %v469
      %v590 = vadd.f32 %v589, %v472
      %v591 = vadd.f32 %v590, %v474
      %v592 = vadd.f32 %v591, %v477
      %v593 = vadd.f32 %v592, %v479
      %v594 = vadd.f32 %v593, %v482
      %v595 = vadd.f32 %v594, %v484
      %v596 = vadd.f32 %v595, %v487
      %v597 = vadd.f32 %v596, %v489
      %v598 = vadd.f32 %v597, %v492
      %v599 = vadd.f32 %v598, %v494
      %v600 = vadd.f32 %v599, %v497
      %v601 = vadd.f32 %v600, %v499
      %v602 = vadd.f32 %v601, %v502
      %v603 = vadd.f32 %v602, %v504
      %v604 = vadd.f32 %v603, %v507
      %v605 = vadd.f32 %v604, %v509
      %v606 = vrot.slane %v605, 4
      %v607 = vadd.f32 %v605, %v606
      %v608 = vrot.slane %v607, 2
      %v609 = vadd.f32 %v607, %v608
      %v610 = vrot.slane %v609, 1
      %v611 = vadd.f32 %v609, %v610
      %612 = vst [vmem:[%s229] sm:$0x1] %v611
      %v613 = vmul.f32 %v432, %v432
      %v614 = vmul.f32 %v434, %v434
      %v615 = vmul.f32 %v437, %v437
      %v616 = vmul.f32 %v439, %v439
      %v617 = vmul.f32 %v442, %v442
      %v618 = vmul.f32 %v444, %v444
      %v619 = vmul.f32 %v447, %v447
      %v620 = vmul.f32 %v449, %v449
      %v621 = vmul.f32 %v452, %v452
      %v622 = vmul.f32 %v454, %v454
      %v623 = vmul.f32 %v457, %v457
      %v624 = vmul.f32 %v459, %v459
      %v625 = vmul.f32 %v462, %v462
      %v626 = vmul.f32 %v464, %v464
      %v627 = vmul.f32 %v467, %v467
      %v628 = vmul.f32 %v469, %v469
      %v629 = vmul.f32 %v472, %v472
      %v630 = vmul.f32 %v474, %v474
      %v631 = vmul.f32 %v477, %v477
      %v632 = vmul.f32 %v479, %v479
      %v633 = vmul.f32 %v482, %v482
      %v634 = vmul.f32 %v484, %v484
      %v635 = vmul.f32 %v487, %v487
      %v636 = vmul.f32 %v489, %v489
      %v637 = vmul.f32 %v492, %v492
      %v638 = vmul.f32 %v494, %v494
      %v639 = vmul.f32 %v497, %v497
      %v640 = vmul.f32 %v499, %v499
      %v641 = vmul.f32 %v502, %v502
      %v642 = vmul.f32 %v504, %v504
      %v643 = vmul.f32 %v507, %v507
      %v644 = vmul.f32 %v509, %v509
      %v645 = vadd.f32 %v613, %v614
      %v646 = vadd.f32 %v645, %v615
      %v647 = vadd.f32 %v646, %v616
      %v648 = vadd.f32 %v647, %v617
      %v649 = vadd.f32 %v648, %v618
      %v650 = vadd.f32 %v649, %v619
      %v651 = vadd.f32 %v650, %v620
      %v652 = vadd.f32 %v651, %v621
      %v653 = vadd.f32 %v652, %v622
      %v654 = vadd.f32 %v653, %v623
      %v655 = vadd.f32 %v654, %v624
      %v656 = vadd.f32 %v655, %v625
      %v657 = vadd.f32 %v656, %v626
      %v658 = vadd.f32 %v657, %v627
      %v659 = vadd.f32 %v658, %v628
      %v660 = vadd.f32 %v659, %v629
      %v661 = vadd.f32 %v660, %v630
      %v662 = vadd.f32 %v661, %v631
      %v663 = vadd.f32 %v662, %v632
      %v664 = vadd.f32 %v663, %v633
      %v665 = vadd.f32 %v664, %v634
      %v666 = vadd.f32 %v665, %v635
      %v667 = vadd.f32 %v666, %v636
      %v668 = vadd.f32 %v667, %v637
      %v669 = vadd.f32 %v668, %v638
      %v670 = vadd.f32 %v669, %v639
      %v671 = vadd.f32 %v670, %v640
      %v672 = vadd.f32 %v671, %v641
      %v673 = vadd.f32 %v672, %v642
      %v674 = vadd.f32 %v673, %v643
      %v675 = vadd.f32 %v674, %v644
      %v676 = vrot.slane %v675, 4
      %v677 = vadd.f32 %v675, %v676
      %v678 = vrot.slane %v677, 2
      %v679 = vadd.f32 %v677, %v678
      %v680 = vrot.slane %v679, 1
      %v681 = vadd.f32 %v679, %v680
      %682 = vst [vmem:[%s229 + $0x1] sm:$0x1] %v681
      %s683 = smul.u32 32, %s19
      %p684 = scmp.lt.s32.totalorder %s683, 63
      %s685 = scalar_select %p684, %s683, 63
      %p686 = scmp.lt.s32.totalorder %s20, 0
      %s687 = scalar_select %p686, %s20, 0
      %s688 = sadd.s32 %s687, %s685
      %s689 = smul.addr %s688, 4
      %s690 = scalar_lea.vmem %s2, %s689
      %p691 = scmp.lt.s32.totalorder %s19, 1
      %s692 = scalar_select %p691, %s19, 1
      %p693 = scmp.lt.s32.totalorder %s20, 0
      %s694 = scalar_select %p693, %s20, 0
      %s695 = sadd.s32 %s694, %s692
      %s696 = smul.addr %s695, 8
      %s697 = scalar_lea.vmem %s3, %s696
      // Predicated region
      $region29: #{residual_block_forward.5} parent=27 // pred_check
        %p698 = pneg %p99
      $region30: #{residual_block_forward.5} parent=27 // pred_check_branch
        %700 = sbr.rel (%p698) target = $region32
      $region31: #{residual_block_forward.5} parent=27 // pred_region
        %s701 = smul.u32 32, %s19
      $region32: #{residual_block_forward.5} parent=27 // pred_fallthru
        _
      // Predicated region
      $region33: #{residual_block_forward.5} parent=27 // pred_check
        %p702 = pneg %p127
      $region34: #{residual_block_forward.5} parent=27 // pred_check_branch
        %704 = sbr.rel (%p702) target = $region36
      $region35: #{residual_block_forward.5} parent=27 // pred_region
        _
      $region36: #{residual_block_forward.5} parent=27 // pred_fallthru
        _
    $region28: #{residual_block_forward.5} parent=5 // pred_fallthru
      _
    %p705 = scmp.le.s32.totalorder 2, %s10
    // Predicated region
    $region37: #{residual_block_forward.5} parent=5 // pred_check
      %p706 = pneg %p705
    $region38: #{residual_block_forward.5} parent=5 // pred_check_branch
      %708 = sbr.rel (%p706) target = $region40
    $region39: #{residual_block_forward.5} parent=5 // pred_region
      %s709 = ssub.s32 %s10, 2
      // Predicated region
      $region41: #{residual_block_forward.5} parent=39 // pred_check
        %p710 = pneg %p105
      $region42: #{residual_block_forward.5} parent=39 // pred_check_branch
        %712 = sbr.rel (%p710) target = $region44
      $region43: #{residual_block_forward.5} parent=39 // pred_region
        %s713 = smul.u32 32, %s21
        %p714 = scmp.lt.s32.totalorder %s713, 63
        %s715 = scalar_select %p714, %s713, 63
        %p716 = scmp.lt.s32.totalorder %s22, 0
        %s717 = scalar_select %p716, %s22, 0
        %s718 = sadd.s32 %s717, %s715
        %s719 = smul.addr %s718, 4
        %s720 = scalar_lea.vmem %s2, %s719
      $region44: #{residual_block_forward.5} parent=39 // pred_fallthru
        _
      // Predicated region
      $region45: #{residual_block_forward.5} parent=39 // pred_check
        %p721 = pneg %p133
      $region46: #{residual_block_forward.5} parent=39 // pred_check_branch
        %723 = sbr.rel (%p721) target = $region48
      $region47: #{residual_block_forward.5} parent=39 // pred_region
        %p724 = scmp.lt.s32.totalorder %s21, 1
        %s725 = scalar_select %p724, %s21, 1
        %p726 = scmp.lt.s32.totalorder %s22, 0
        %s727 = scalar_select %p726, %s22, 0
        %s728 = sadd.s32 %s727, %s725
        %s729 = smul.addr %s728, 8
        %s730 = scalar_lea.vmem %s3, %s729
      $region48: #{residual_block_forward.5} parent=39 // pred_fallthru
        _
    $region40: #{residual_block_forward.5} parent=5 // pred_fallthru
      _
  $region6: #{residual_block_forward.5} parent=0 // loop_footer
    %s14 = sadd.s32 1, %s10
  $region7: #{residual_block_forward.5} parent=0 // loop_footer_branch
    %9 = sbr.rel target = $region3
  $region8: #{residual_block_forward.5} parent=0 // loop_exit
    _

// kernel: residual_block_forward.9
$region0: #{residual_block_forward.9}
  #allocation0 [shape = 'u32[]', space=smem, size = 0x4, offset = 0x4, fixed_abs, tag = 'smem constant byte address 0x4 - core index']
  #allocation1 [shape = 'u32[72,128]{1,0:T(1,128)}', space=vmem, size = 0x9000, scoped, tag = 'internal scratch']
  %s0 = inlined_call_operand.vmem [shape: bf16[512,128], index: 0, kind: input, shape index: {}]
  %s1 = inlined_call_operand.vmem [shape: bf16[512,128], index: 1, kind: input, shape index: {}]
  %s2 = inlined_call_operand.vmem [shape: f32[8,128], index: 2, kind: input, shape index: {}]
  %s3 = inlined_call_operand.vmem [shape: f32[512,128], index: 3, kind: output, shape index: {}]
  %s4 = sld [smem:[#allocation0]]
  $region45: #{residual_block_forward.9} parent=0
    _
  %s6 = ssub.s32 1, %s4
  %s7 = scalar_select 0, %s6, %s4
  loop: start=0, step=1, limit=4
  $region2: #{residual_block_forward.9} parent=0 // loop_pre_header
    _
  $region3: #{residual_block_forward.9} parent=0 // loop_header
    %s9 = sphi 0, %s13
    %p10 = scmp.ge.s32.totalorder %s9, 4
    %s19 = sphi 0, %s21
    %s22 = sphi 0, %s19
    %s23 = sphi 0, %s22
    %s39 = sphi 0, %s23
    %s45 = sphi 0, %s47
    %s48 = sphi 0, %s45
    %s49 = sphi 0, %s48
    %s65 = sphi 0, %s49
    %s69 = sphi 0, %s69
    %s71 = sphi 0, %s69
    %s72 = sphi 0, %s71
    %s86 = sphi 0, %s72
    %s92 = sphi 0, %s94
    %s95 = sphi 0, %s92
    %s96 = sphi 0, %s95
    %s112 = sphi 0, %s96
  $region4: #{residual_block_forward.9} parent=0 // loop_header_branch
    %12 = sbr.rel (%p10) target = $region8
  $region5: #{residual_block_forward.9} parent=0 // loop_body
    %s14 = ssub.s32 %s9, 1
    %s15 = ssub.s32 %s9, 2
    %s16 = sadd.s32 %s9, 1
    %s17 = ssub.s32 %s9, %s16
    %p18 = scmp.eq.s32.totalorder %s17, 0
    %s20 = sadd.s32 %s19, 1
    %s21 = scalar_select %p18, %s19, %s20
    %p24 = pneg %p18
    %p25 = scmp.eq.s32.totalorder %s9, 1
    %p26 = por %p24, %p25
    %p27 = scmp.ne.s32.totalorder %s19, %s22
    %p28 = scmp.eq.s32.totalorder %s9, 0
    %p29 = por %p27, %p28
    %p30 = scmp.ne.s32.totalorder %s19, %s22
    %p31 = scmp.eq.s32.totalorder %s14, 1
    %p32 = por %p30, %p31
    %p33 = scmp.ne.s32.totalorder %s22, %s23
    %p34 = scmp.eq.s32.totalorder %s14, 0
    %p35 = por %p33, %p34
    %p36 = scmp.ne.s32.totalorder %s22, %s23
    %p37 = scmp.eq.s32.totalorder %s15, 1
    %p38 = por %p36, %p37
    %p40 = scmp.ne.s32.totalorder %s23, %s39
    %p41 = scmp.eq.s32.totalorder %s15, 0
    %p42 = por %p40, %p41
    %s43 = ssub.s32 %s9, %s16
    %p44 = scmp.eq.s32.totalorder %s43, 0
    %s46 = sadd.s32 %s45, 1
    %s47 = scalar_select %p44, %s45, %s46
    %p50 = pneg %p44
    %p51 = scmp.eq.s32.totalorder %s9, 1
    %p52 = por %p50, %p51
    %p53 = scmp.ne.s32.totalorder %s45, %s48
    %p54 = scmp.eq.s32.totalorder %s9, 0
    %p55 = por %p53, %p54
    %p56 = scmp.ne.s32.totalorder %s45, %s48
    %p57 = scmp.eq.s32.totalorder %s14, 1
    %p58 = por %p56, %p57
    %p59 = scmp.ne.s32.totalorder %s48, %s49
    %p60 = scmp.eq.s32.totalorder %s14, 0
    %p61 = por %p59, %p60
    %p62 = scmp.ne.s32.totalorder %s48, %s49
    %p63 = scmp.eq.s32.totalorder %s15, 1
    %p64 = por %p62, %p63
    %p66 = scmp.ne.s32.totalorder %s49, %s65
    %p67 = scmp.eq.s32.totalorder %s15, 0
    %p68 = por %p66, %p67
    %s70 = sadd.s32 %s69, 1
    %p73 = scmp.eq.s32.totalorder %s9, 1
    %p74 = scmp.ne.s32.totalorder %s69, %s71
    %p75 = scmp.eq.s32.totalorder %s9, 0
    %p76 = por %p74, %p75
    %p77 = scmp.ne.s32.totalorder %s69, %s71
    %p78 = scmp.eq.s32.totalorder %s14, 1
    %p79 = por %p77, %p78
    %p80 = scmp.ne.s32.totalorder %s71, %s72
    %p81 = scmp.eq.s32.totalorder %s14, 0
    %p82 = por %p80, %p81
    %p83 = scmp.ne.s32.totalorder %s71, %s72
    %p84 = scmp.eq.s32.totalorder %s15, 1
    %p85 = por %p83, %p84
    %p87 = scmp.ne.s32.totalorder %s72, %s86
    %p88 = scmp.eq.s32.totalorder %s15, 0
    %p89 = por %p87, %p88
    %s90 = ssub.s32 %s9, %s16
    %p91 = scmp.eq.s32.totalorder %s90, 0
    %s93 = sadd.s32 %s92, 1
    %s94 = scalar_select %p91, %s92, %s93
    %p97 = pneg %p91
    %p98 = scmp.eq.s32.totalorder %s9, 1
    %p99 = por %p97, %p98
    %p100 = scmp.ne.s32.totalorder %s92, %s95
    %p101 = scmp.eq.s32.totalorder %s9, 0
    %p102 = por %p100, %p101
    %p103 = scmp.ne.s32.totalorder %s92, %s95
    %p104 = scmp.eq.s32.totalorder %s14, 1
    %p105 = por %p103, %p104
    %p106 = scmp.ne.s32.totalorder %s95, %s96
    %p107 = scmp.eq.s32.totalorder %s14, 0
    %p108 = por %p106, %p107
    %p109 = scmp.ne.s32.totalorder %s95, %s96
    %p110 = scmp.eq.s32.totalorder %s15, 1
    %p111 = por %p109, %p110
    %p113 = scmp.ne.s32.totalorder %s96, %s112
    %p114 = scmp.eq.s32.totalorder %s15, 0
    %p115 = por %p113, %p114
    %p116 = scmp.le.s32.totalorder 1, %s9
    %p117 = scmp.lt.s32.totalorder %s9, 3
    %p118 = pnand %p116, %p117
    %p119 = pneg %p118
    // Predicated region
    $region9: #{residual_block_forward.9} parent=5 // pred_check
      _
    $region10: #{residual_block_forward.9} parent=5 // pred_check_branch
      %121 = sbr.rel (%p118) target = $region12
    $region11: #{residual_block_forward.9} parent=5 // pred_region
      %s122 = ssub.s32 %s9, 1
      // Predicated region
      $region13: #{residual_block_forward.9} parent=11 // pred_check
        %p123 = pneg %p82
      $region14: #{residual_block_forward.9} parent=11 // pred_check_branch
        %125 = sbr.rel (%p123) target = $region16
      $region15: #{residual_block_forward.9} parent=11 // pred_region
        _
      $region16: #{residual_block_forward.9} parent=11 // pred_fallthru
        _
    $region12: #{residual_block_forward.9} parent=5 // pred_fallthru
      _
    %p126 = scmp.lt.s32.totalorder %s9, 2
    // Predicated region
    $region17: #{residual_block_forward.9} parent=5 // pred_check
      %p127 = pneg %p126
    $region18: #{residual_block_forward.9} parent=5 // pred_check_branch
      %129 = sbr.rel (%p127) target = $region20
    $region19: #{residual_block_forward.9} parent=5 // pred_region
      // Predicated region
      $region21: #{residual_block_forward.9} parent=19 // pred_check
        %p130 = pneg %p29
      $region22: #{residual_block_forward.9} parent=19 // pred_check_branch
        %132 = sbr.rel (%p130) target = $region24
      $region23: #{residual_block_forward.9} parent=19 // pred_region
        %s133 = smul.u32 32, %s9
        %p134 = scmp.lt.s32.totalorder %s133, 63
        %s135 = scalar_select %p134, %s133, 63
        %s136 = smul.addr %s135, 4
        %s137 = scalar_lea.vmem %s0, %s136
        %s138 = smul.u32 32, %s9
      $region24: #{residual_block_forward.9} parent=19 // pred_fallthru
        _
      // Predicated region
      $region25: #{residual_block_forward.9} parent=19 // pred_check
        %p139 = pneg %p55
      $region26: #{residual_block_forward.9} parent=19 // pred_check_branch
        %141 = sbr.rel (%p139) target = $region28
      $region27: #{residual_block_forward.9} parent=19 // pred_region
        %s142 = smul.u32 32, %s9
        %p143 = scmp.lt.s32.totalorder %s142, 63
        %s144 = scalar_select %p143, %s142, 63
        %s145 = smul.addr %s144, 4
        %s146 = scalar_lea.vmem %s1, %s145
        %s147 = smul.u32 32, %s9
      $region28: #{residual_block_forward.9} parent=19 // pred_fallthru
        _
    $region20: #{residual_block_forward.9} parent=5 // pred_fallthru
      _
    %p148 = scmp.le.s32.totalorder 1, %s9
    %p149 = scmp.lt.s32.totalorder %s9, 3
    %p150 = pnand %p148, %p149
    %p151 = pneg %p150
    // Predicated region
    $region29: #{residual_block_forward.9} parent=5 // pred_check
      _
    $region30: #{residual_block_forward.9} parent=5 // pred_check_branch
      %153 = sbr.rel (%p150) target = $region32
    $region31: #{residual_block_forward.9} parent=5 // pred_region
      %s154 = ssub.s32 %s9, 1
      %s155 = smul.u32 32, %s14
      %p156 = scmp.lt.s32.totalorder %s155, 63
      %s157 = scalar_select %p156, %s155, 63
      %s158 = smul.addr %s157, 4
      %s159 = scalar_lea.vmem %s0, %s158
      %p160 = pneg %p35
      %p161 = pneg %p32
      %s162 = smul.u32 32, %s14
      %p163 = scmp.lt.s32.totalorder %s162, 63
      %s164 = scalar_select %p163, %s162, 63
      %s165 = smul.addr %s164, 4
      %s166 = scalar_lea.vmem %s1, %s165
      %p167 = pneg %p61
      %p168 = pneg %p58
      %p169 = pneg %p82
      %p170 = pneg %p79
      %p171 = pneg %p108
      %p172 = pneg %p105
      %s173 = smul.u32 32, %s14
      %p174 = scmp.lt.s32.totalorder %s173, 63
      %s175 = scalar_select %p174, %s173, 63
      %s176 = smul.addr %s175, 8
      %s177 = scalar_lea.vmem %s3, %s176
      %s178 = smul.u32 32, %s14
      %p179 = scmp.lt.s32.totalorder %s178, 63
      %s180 = scalar_select %p179, %s178, 63
      %s181 = smul.addr %s180, 4
      %s182 = scalar_lea.vmem %s0, %s181
      %s183 = smul.u32 32, %s14
      %s184 = smul.u32 32, %s14
      %p185 = scmp.lt.s32.totalorder %s184, 63
      %s186 = scalar_select %p185, %s184, 63
      %s187 = smul.addr %s186, 4
      %s188 = scalar_lea.vmem %s1, %s187
      %s189 = smul.u32 32, %s14
      %s190 = smul.u32 32, %s14
      %p191 = scmp.lt.s32.totalorder %s190, 63
      %s192 = scalar_select %p191, %s190, 63
      %s193 = smul.addr %s192, 8
      %s194 = scalar_lea.vmem %s3, %s193
      %s195 = smul.u32 32, %s14
      %v196 = vld [vmem:[%s182] sm:$0xf]
      %v197 = vld [vmem:[%s182 + $0x4] sm:$0xf]
      %v198 = vld [vmem:[%s182 + $0x8] sm:$0xf]
      %v199 = vld [vmem:[%s182 + $0xc] sm:$0xf]
      %v200 = vld [vmem:[%s182 + $0x10] sm:$0xf]
      %v201 = vld [vmem:[%s182 + $0x14] sm:$0xf]
      %v202 = vld [vmem:[%s182 + $0x18] sm:$0xf]
      %v203 = vld [vmem:[%s182 + $0x1c] sm:$0xf]
      %v204 = vld [vmem:[%s182 + $0x20] sm:$0xf]
      %v205 = vld [vmem:[%s182 + $0x24] sm:$0xf]
      %v206 = vld [vmem:[%s182 + $0x28] sm:$0xf]
      %v207 = vld [vmem:[%s182 + $0x2c] sm:$0xf]
      %v208 = vld [vmem:[%s182 + $0x30] sm:$0xf]
      %v209 = vld [vmem:[%s182 + $0x34] sm:$0xf]
      %v210 = vld [vmem:[%s182 + $0x38] sm:$0xf]
      %v211 = vld [vmem:[%s182 + $0x3c] sm:$0xf]
      %v212 = vld [vmem:[%s182 + $0x40] sm:$0xf]
      %v213 = vld [vmem:[%s182 + $0x44] sm:$0xf]
      %v214 = vld [vmem:[%s182 + $0x48] sm:$0xf]
      %v215 = vld [vmem:[%s182 + $0x4c] sm:$0xf]
      %v216 = vld [vmem:[%s182 + $0x50] sm:$0xf]
      %v217 = vld [vmem:[%s182 + $0x54] sm:$0xf]
      %v218 = vld [vmem:[%s182 + $0x58] sm:$0xf]
      %v219 = vld [vmem:[%s182 + $0x5c] sm:$0xf]
      %v220 = vld [vmem:[%s182 + $0x60] sm:$0xf]
      %v221 = vld [vmem:[%s182 + $0x64] sm:$0xf]
      %v222 = vld [vmem:[%s182 + $0x68] sm:$0xf]
      %v223 = vld [vmem:[%s182 + $0x6c] sm:$0xf]
      %v224 = vld [vmem:[%s182 + $0x70] sm:$0xf]
      %v225 = vld [vmem:[%s182 + $0x74] sm:$0xf]
      %v226 = vld [vmem:[%s182 + $0x78] sm:$0xf]
      %v227 = vld [vmem:[%s182 + $0x7c] sm:$0xf]
      %v228 = vunpack.c.l.bf16 %v196
      %v229 = vunpack.c.l.bf16 %v197
      %v230 = vunpack.c.l.bf16 %v198
      %v231 = vunpack.c.l.bf16 %v199
      %v232 = vunpack.c.l.bf16 %v200
      %v233 = vunpack.c.l.bf16 %v201
      %v234 = vunpack.c.l.bf16 %v202
      %v235 = vunpack.c.l.bf16 %v203
      %v236 = vunpack.c.l.bf16 %v204
      %v237 = vunpack.c.l.bf16 %v205
      %v238 = vunpack.c.l.bf16 %v206
      %v239 = vunpack.c.l.bf16 %v207
      %v240 = vunpack.c.l.bf16 %v208
      %v241 = vunpack.c.l.bf16 %v209
      %v242 = vunpack.c.l.bf16 %v210
      %v243 = vunpack.c.l.bf16 %v211
      %v244 = vunpack.c.l.bf16 %v212
      %v245 = vunpack.c.l.bf16 %v213
      %v246 = vunpack.c.l.bf16 %v214
      %v247 = vunpack.c.l.bf16 %v215
      %v248 = vunpack.c.l.bf16 %v216
      %v249 = vunpack.c.l.bf16 %v217
      %v250 = vunpack.c.l.bf16 %v218
      %v251 = vunpack.c.l.bf16 %v219
      %v252 = vunpack.c.l.bf16 %v220
      %v253 = vunpack.c.l.bf16 %v221
      %v254 = vunpack.c.l.bf16 %v222
      %v255 = vunpack.c.l.bf16 %v223
      %v256 = vunpack.c.l.bf16 %v224
      %v257 = vunpack.c.l.bf16 %v225
      %v258 = vunpack.c.l.bf16 %v226
      %v259 = vunpack.c.l.bf16 %v227
      %v260 = vld [vmem:[%s2] sm:$0x1]
      %v261 = vperm.slane %v260, 0
      %v262 = vmul.f32 %v228, %v261
      %v263 = vmul.f32 %v229, %v261
      %v264 = vmul.f32 %v230, %v261
      %v265 = vmul.f32 %v231, %v261
      %v266 = vmul.f32 %v232, %v261
      %v267 = vmul.f32 %v233, %v261
      %v268 = vmul.f32 %v234, %v261
      %v269 = vmul.f32 %v235, %v261
      %v270 = vmul.f32 %v236, %v261
      %v271 = vmul.f32 %v237, %v261
      %v272 = vmul.f32 %v238, %v261
      %v273 = vmul.f32 %v239, %v261
      %v274 = vmul.f32 %v240, %v261
      %v275 = vmul.f32 %v241, %v261
      %v276 = vmul.f32 %v242, %v261
      %v277 = vmul.f32 %v243, %v261
      %v278 = vmul.f32 %v244, %v261
      %v279 = vmul.f32 %v245, %v261
      %v280 = vmul.f32 %v246, %v261
      %v281 = vmul.f32 %v247, %v261
      %v282 = vmul.f32 %v248, %v261
      %v283 = vmul.f32 %v249, %v261
      %v284 = vmul.f32 %v250, %v261
      %v285 = vmul.f32 %v251, %v261
      %v286 = vmul.f32 %v252, %v261
      %v287 = vmul.f32 %v253, %v261
      %v288 = vmul.f32 %v254, %v261
      %v289 = vmul.f32 %v255, %v261
      %v290 = vmul.f32 %v256, %v261
      %v291 = vmul.f32 %v257, %v261
      %v292 = vmul.f32 %v258, %v261
      %v293 = vmul.f32 %v259, %v261
      %v294 = vld [vmem:[%s2 + $0x1] sm:$0x1]
      %v295 = vperm.slane %v294, 0
      %v296 = vadd.f32 %v262, %v295
      %v297 = vadd.f32 %v263, %v295
      %v298 = vadd.f32 %v264, %v295
      %v299 = vadd.f32 %v265, %v295
      %v300 = vadd.f32 %v266, %v295
      %v301 = vadd.f32 %v267, %v295
      %v302 = vadd.f32 %v268, %v295
      %v303 = vadd.f32 %v269, %v295
      %v304 = vadd.f32 %v270, %v295
      %v305 = vadd.f32 %v271, %v295
      %v306 = vadd.f32 %v272, %v295
      %v307 = vadd.f32 %v273, %v295
      %v308 = vadd.f32 %v274, %v295
      %v309 = vadd.f32 %v275, %v295
      %v310 = vadd.f32 %v276, %v295
      %v311 = vadd.f32 %v277, %v295
      %v312 = vadd.f32 %v278, %v295
      %v313 = vadd.f32 %v279, %v295
      %v314 = vadd.f32 %v280, %v295
      %v315 = vadd.f32 %v281, %v295
      %v316 = vadd.f32 %v282, %v295
      %v317 = vadd.f32 %v283, %v295
      %v318 = vadd.f32 %v284, %v295
      %v319 = vadd.f32 %v285, %v295
      %v320 = vadd.f32 %v286, %v295
      %v321 = vadd.f32 %v287, %v295
      %v322 = vadd.f32 %v288, %v295
      %v323 = vadd.f32 %v289, %v295
      %v324 = vadd.f32 %v290, %v295
      %v325 = vadd.f32 %v291, %v295
      %v326 = vadd.f32 %v292, %v295
      %v327 = vadd.f32 %v293, %v295
      %v328 = vld [vmem:[%s188] sm:$0xf]
      %v329 = vld [vmem:[%s188 + $0x4] sm:$0xf]
      %v330 = vld [vmem:[%s188 + $0x8] sm:$0xf]
      %v331 = vld [vmem:[%s188 + $0xc] sm:$0xf]
      %v332 = vld [vmem:[%s188 + $0x10] sm:$0xf]
      %v333 = vld [vmem:[%s188 + $0x14] sm:$0xf]
      %v334 = vld [vmem:[%s188 + $0x18] sm:$0xf]
      %v335 = vld [vmem:[%s188 + $0x1c] sm:$0xf]
      %v336 = vld [vmem:[%s188 + $0x20] sm:$0xf]
      %v337 = vld [vmem:[%s188 + $0x24] sm:$0xf]
      %v338 = vld [vmem:[%s188 + $0x28] sm:$0xf]
      %v339 = vld [vmem:[%s188 + $0x2c] sm:$0xf]
      %v340 = vld [vmem:[%s188 + $0x30] sm:$0xf]
      %v341 = vld [vmem:[%s188 + $0x34] sm:$0xf]
      %v342 = vld [vmem:[%s188 + $0x38] sm:$0xf]
      %v343 = vld [vmem:[%s188 + $0x3c] sm:$0xf]
      %v344 = vld [vmem:[%s188 + $0x40] sm:$0xf]
      %v345 = vld [vmem:[%s188 + $0x44] sm:$0xf]
      %v346 = vld [vmem:[%s188 + $0x48] sm:$0xf]
      %v347 = vld [vmem:[%s188 + $0x4c] sm:$0xf]
      %v348 = vld [vmem:[%s188 + $0x50] sm:$0xf]
      %v349 = vld [vmem:[%s188 + $0x54] sm:$0xf]
      %v350 = vld [vmem:[%s188 + $0x58] sm:$0xf]
      %v351 = vld [vmem:[%s188 + $0x5c] sm:$0xf]
      %v352 = vld [vmem:[%s188 + $0x60] sm:$0xf]
      %v353 = vld [vmem:[%s188 + $0x64] sm:$0xf]
      %v354 = vld [vmem:[%s188 + $0x68] sm:$0xf]
      %v355 = vld [vmem:[%s188 + $0x6c] sm:$0xf]
      %v356 = vld [vmem:[%s188 + $0x70] sm:$0xf]
      %v357 = vld [vmem:[%s188 + $0x74] sm:$0xf]
      %v358 = vld [vmem:[%s188 + $0x78] sm:$0xf]
      %v359 = vld [vmem:[%s188 + $0x7c] sm:$0xf]
      %v360 = vunpack.c.l.bf16 %v328
      %v361 = vunpack.c.l.bf16 %v329
      %v362 = vunpack.c.l.bf16 %v330
      %v363 = vunpack.c.l.bf16 %v331
      %v364 = vunpack.c.l.bf16 %v332
      %v365 = vunpack.c.l.bf16 %v333
      %v366 = vunpack.c.l.bf16 %v334
      %v367 = vunpack.c.l.bf16 %v335
      %v368 = vunpack.c.l.bf16 %v336
      %v369 = vunpack.c.l.bf16 %v337
      %v370 = vunpack.c.l.bf16 %v338
      %v371 = vunpack.c.l.bf16 %v339
      %v372 = vunpack.c.l.bf16 %v340
      %v373 = vunpack.c.l.bf16 %v341
      %v374 = vunpack.c.l.bf16 %v342
      %v375 = vunpack.c.l.bf16 %v343
      %v376 = vunpack.c.l.bf16 %v344
      %v377 = vunpack.c.l.bf16 %v345
      %v378 = vunpack.c.l.bf16 %v346
      %v379 = vunpack.c.l.bf16 %v347
      %v380 = vunpack.c.l.bf16 %v348
      %v381 = vunpack.c.l.bf16 %v349
      %v382 = vunpack.c.l.bf16 %v350
      %v383 = vunpack.c.l.bf16 %v351
      %v384 = vunpack.c.l.bf16 %v352
      %v385 = vunpack.c.l.bf16 %v353
      %v386 = vunpack.c.l.bf16 %v354
      %v387 = vunpack.c.l.bf16 %v355
      %v388 = vunpack.c.l.bf16 %v356
      %v389 = vunpack.c.l.bf16 %v357
      %v390 = vunpack.c.l.bf16 %v358
      %v391 = vunpack.c.l.bf16 %v359
      %v392 = vld [vmem:[%s2 + $0x2] sm:$0x1]
      %v393 = vperm.slane %v392, 0
      %v394 = vmul.f32 %v360, %v393
      %v395 = vmul.f32 %v361, %v393
      %v396 = vmul.f32 %v362, %v393
      %v397 = vmul.f32 %v363, %v393
      %v398 = vmul.f32 %v364, %v393
      %v399 = vmul.f32 %v365, %v393
      %v400 = vmul.f32 %v366, %v393
      %v401 = vmul.f32 %v367, %v393
      %v402 = vmul.f32 %v368, %v393
      %v403 = vmul.f32 %v369, %v393
      %v404 = vmul.f32 %v370, %v393
      %v405 = vmul.f32 %v371, %v393
      %v406 = vmul.f32 %v372, %v393
      %v407 = vmul.f32 %v373, %v393
      %v408 = vmul.f32 %v374, %v393
      %v409 = vmul.f32 %v375, %v393
      %v410 = vmul.f32 %v376, %v393
      %v411 = vmul.f32 %v377, %v393
      %v412 = vmul.f32 %v378, %v393
      %v413 = vmul.f32 %v379, %v393
      %v414 = vmul.f32 %v380, %v393
      %v415 = vmul.f32 %v381, %v393
      %v416 = vmul.f32 %v382, %v393
      %v417 = vmul.f32 %v383, %v393
      %v418 = vmul.f32 %v384, %v393
      %v419 = vmul.f32 %v385, %v393
      %v420 = vmul.f32 %v386, %v393
      %v421 = vmul.f32 %v387, %v393
      %v422 = vmul.f32 %v388, %v393
      %v423 = vmul.f32 %v389, %v393
      %v424 = vmul.f32 %v390, %v393
      %v425 = vmul.f32 %v391, %v393
      %v426 = vadd.f32 %v296, %v394
      %v427 = vadd.f32 %v297, %v395
      %v428 = vadd.f32 %v298, %v396
      %v429 = vadd.f32 %v299, %v397
      %v430 = vadd.f32 %v300, %v398
      %v431 = vadd.f32 %v301, %v399
      %v432 = vadd.f32 %v302, %v400
      %v433 = vadd.f32 %v303, %v401
      %v434 = vadd.f32 %v304, %v402
      %v435 = vadd.f32 %v305, %v403
      %v436 = vadd.f32 %v306, %v404
      %v437 = vadd.f32 %v307, %v405
      %v438 = vadd.f32 %v308, %v406
      %v439 = vadd.f32 %v309, %v407
      %v440 = vadd.f32 %v310, %v408
      %v441 = vadd.f32 %v311, %v409
      %v442 = vadd.f32 %v312, %v410
      %v443 = vadd.f32 %v313, %v411
      %v444 = vadd.f32 %v314, %v412
      %v445 = vadd.f32 %v315, %v413
      %v446 = vadd.f32 %v316, %v414
      %v447 = vadd.f32 %v317, %v415
      %v448 = vadd.f32 %v318, %v416
      %v449 = vadd.f32 %v319, %v417
      %v450 = vadd.f32 %v320, %v418
      %v451 = vadd.f32 %v321, %v419
      %v452 = vadd.f32 %v322, %v420
      %v453 = vadd.f32 %v323, %v421
      %v454 = vadd.f32 %v324, %v422
      %v455 = vadd.f32 %v325, %v423
      %v456 = vadd.f32 %v326, %v424
      %v457 = vadd.f32 %v327, %v425
      %v458 = vld [vmem:[%s2 + $0x3] sm:$0x1]
      %v459 = vperm.slane %v458, 0
      %v460 = vadd.f32 %v426, %v459
      %v461 = vadd.f32 %v427, %v459
      %v462 = vadd.f32 %v428, %v459
      %v463 = vadd.f32 %v429, %v459
      %v464 = vadd.f32 %v430, %v459
      %v465 = vadd.f32 %v431, %v459
      %v466 = vadd.f32 %v432, %v459
      %v467 = vadd.f32 %v433, %v459
      %v468 = vadd.f32 %v434, %v459
      %v469 = vadd.f32 %v435, %v459
      %v470 = vadd.f32 %v436, %v459
      %v471 = vadd.f32 %v437, %v459
      %v472 = vadd.f32 %v438, %v459
      %v473 = vadd.f32 %v439, %v459
      %v474 = vadd.f32 %v440, %v459
      %v475 = vadd.f32 %v441, %v459
      %v476 = vadd.f32 %v442, %v459
      %v477 = vadd.f32 %v443, %v459
      %v478 = vadd.f32 %v444, %v459
      %v479 = vadd.f32 %v445, %v459
      %v480 = vadd.f32 %v446, %v459
      %v481 = vadd.f32 %v447, %v459
      %v482 = vadd.f32 %v448, %v459
      %v483 = vadd.f32 %v449, %v459
      %v484 = vadd.f32 %v450, %v459
      %v485 = vadd.f32 %v451, %v459
      %v486 = vadd.f32 %v452, %v459
      %v487 = vadd.f32 %v453, %v459
      %v488 = vadd.f32 %v454, %v459
      %v489 = vadd.f32 %v455, %v459
      %v490 = vadd.f32 %v456, %v459
      %v491 = vadd.f32 %v457, %v459
      %v492 = vmax.f32 %v460, 0.0
      %v493 = vmax.f32 %v461, 0.0
      %v494 = vmax.f32 %v462, 0.0
      %v495 = vmax.f32 %v463, 0.0
      %v496 = vmax.f32 %v464, 0.0
      %v497 = vmax.f32 %v465, 0.0
      %v498 = vmax.f32 %v466, 0.0
      %v499 = vmax.f32 %v467, 0.0
      %v500 = vmax.f32 %v468, 0.0
      %v501 = vmax.f32 %v469, 0.0
      %v502 = vmax.f32 %v470, 0.0
      %v503 = vmax.f32 %v471, 0.0
      %v504 = vmax.f32 %v472, 0.0
      %v505 = vmax.f32 %v473, 0.0
      %v506 = vmax.f32 %v474, 0.0
      %v507 = vmax.f32 %v475, 0.0
      %v508 = vmax.f32 %v476, 0.0
      %v509 = vmax.f32 %v477, 0.0
      %v510 = vmax.f32 %v478, 0.0
      %v511 = vmax.f32 %v479, 0.0
      %v512 = vmax.f32 %v480, 0.0
      %v513 = vmax.f32 %v481, 0.0
      %v514 = vmax.f32 %v482, 0.0
      %v515 = vmax.f32 %v483, 0.0
      %v516 = vmax.f32 %v484, 0.0
      %v517 = vmax.f32 %v485, 0.0
      %v518 = vmax.f32 %v486, 0.0
      %v519 = vmax.f32 %v487, 0.0
      %v520 = vmax.f32 %v488, 0.0
      %v521 = vmax.f32 %v489, 0.0
      %v522 = vmax.f32 %v490, 0.0
      %v523 = vmax.f32 %v491, 0.0
      %524 = vst [vmem:[%s194] sm:$0xff] %v492
      %525 = vst [vmem:[%s194 + $0x8] sm:$0xff] %v493
      %526 = vst [vmem:[%s194 + $0x10] sm:$0xff] %v494
      %527 = vst [vmem:[%s194 + $0x18] sm:$0xff] %v495
      %528 = vst [vmem:[%s194 + $0x20] sm:$0xff] %v496
      %529 = vst [vmem:[%s194 + $0x28] sm:$0xff] %v497
      %530 = vst [vmem:[%s194 + $0x30] sm:$0xff] %v498
      %531 = vst [vmem:[%s194 + $0x38] sm:$0xff] %v499
      %532 = vst [vmem:[%s194 + $0x40] sm:$0xff] %v500
      %533 = vst [vmem:[%s194 + $0x48] sm:$0xff] %v501
      %534 = vst [vmem:[%s194 + $0x50] sm:$0xff] %v502
      %535 = vst [vmem:[%s194 + $0x58] sm:$0xff] %v503
      %536 = vst [vmem:[%s194 + $0x60] sm:$0xff] %v504
      %537 = vst [vmem:[%s194 + $0x68] sm:$0xff] %v505
      %538 = vst [vmem:[%s194 + $0x70] sm:$0xff] %v506
      %539 = vst [vmem:[%s194 + $0x78] sm:$0xff] %v507
      %540 = vst [vmem:[%s194 + $0x80] sm:$0xff] %v508
      %541 = vst [vmem:[%s194 + $0x88] sm:$0xff] %v509
      %542 = vst [vmem:[%s194 + $0x90] sm:$0xff] %v510
      %543 = vst [vmem:[%s194 + $0x98] sm:$0xff] %v511
      %544 = vst [vmem:[%s194 + $0xa0] sm:$0xff] %v512
      %545 = vst [vmem:[%s194 + $0xa8] sm:$0xff] %v513
      %546 = vst [vmem:[%s194 + $0xb0] sm:$0xff] %v514
      %547 = vst [vmem:[%s194 + $0xb8] sm:$0xff] %v515
      %548 = vst [vmem:[%s194 + $0xc0] sm:$0xff] %v516
      %549 = vst [vmem:[%s194 + $0xc8] sm:$0xff] %v517
      %550 = vst [vmem:[%s194 + $0xd0] sm:$0xff] %v518
      %551 = vst [vmem:[%s194 + $0xd8] sm:$0xff] %v519
      %552 = vst [vmem:[%s194 + $0xe0] sm:$0xff] %v520
      %553 = vst [vmem:[%s194 + $0xe8] sm:$0xff] %v521
      %554 = vst [vmem:[%s194 + $0xf0] sm:$0xff] %v522
      %555 = vst [vmem:[%s194 + $0xf8] sm:$0xff] %v523
      %s556 = smul.u32 32, %s14
      %p557 = scmp.lt.s32.totalorder %s556, 63
      %s558 = scalar_select %p557, %s556, 63
      %s559 = smul.addr %s558, 8
      %s560 = scalar_lea.vmem %s3, %s559
      // Predicated region
      $region33: #{residual_block_forward.9} parent=31 // pred_check
        %p561 = pneg %p105
      $region34: #{residual_block_forward.9} parent=31 // pred_check_branch
        %563 = sbr.rel (%p561) target = $region36
      $region35: #{residual_block_forward.9} parent=31 // pred_region
        %s564 = smul.u32 32, %s14
      $region36: #{residual_block_forward.9} parent=31 // pred_fallthru
        _
    $region32: #{residual_block_forward.9} parent=5 // pred_fallthru
      _
    %p565 = scmp.le.s32.totalorder 2, %s9
    // Predicated region
    $region37: #{residual_block_forward.9} parent=5 // pred_check
      %p566 = pneg %p565
    $region38: #{residual_block_forward.9} parent=5 // pred_check_branch
      %568 = sbr.rel (%p566) target = $region40
    $region39: #{residual_block_forward.9} parent=5 // pred_region
      %s569 = ssub.s32 %s9, 2
      // Predicated region
      $region41: #{residual_block_forward.9} parent=39 // pred_check
        %p570 = pneg %p111
      $region42: #{residual_block_forward.9} parent=39 // pred_check_branch
        %572 = sbr.rel (%p570) target = $region44
      $region43: #{residual_block_forward.9} parent=39 // pred_region
        %s573 = smul.u32 32, %s15
        %p574 = scmp.lt.s32.totalorder %s573, 63
        %s575 = scalar_select %p574, %s573, 63
        %s576 = smul.addr %s575, 8
        %s577 = scalar_lea.vmem %s3, %s576
      $region44: #{residual_block_forward.9} parent=39 // pred_fallthru
        _
    $region40: #{residual_block_forward.9} parent=5 // pred_fallthru
      _
  $region6: #{residual_block_forward.9} parent=0 // loop_footer
    %s13 = sadd.s32 1, %s9
  $region7: #{residual_block_forward.9} parent=0 // loop_footer_branch
    %8 = sbr.rel target = $region3
  $region8: #{residual_block_forward.9} parent=0 // loop_exit
    _

</llo_original>
